<compile_context>
chip_gen: v5e
topology: v5e:2x2
jax: 0.10.0
libtpu: 0.0.40
codegen_flags: <defaults>
</compile_context>

<pallas_src>
import math
from functools import partial

import jax
import jax.numpy as jnp
from jax import lax
from jax.experimental import pallas as pl
from jax.experimental.pallas import tpu as pltpu

LN_EPS = 1e-5


def _round_up(x, m):
    return ((x + m - 1) // m) * m


# ----------------------------------------------------------------------------
# Fused model kernel: grid=(depth,), activation resident in VMEM scratch.
# ----------------------------------------------------------------------------
def _fused_model_kernel(t_ref, fB_ref, x0_ref, ln_ref,
                        wqkv_ref, bqkv_ref, kvb_ref,
                        wout_ref, bout_ref,
                        wm1_ref, bm1_ref, wm2_ref, bm2_ref,
                        wctx_ref, bctx_ref,
                        wfin_ref, bfin_ref,
                        o_ref, x_sc, temb_sc,
                        *, num_heads, head_dim, d_real, seq_len):
    d = pl.program_id(0)
    L_pad, D_pad = x_sc.shape
    bf16 = jnp.bfloat16

    # Masks for the padded feature lanes.
    lane = lax.broadcasted_iota(jnp.int32, (1, D_pad), 1)
    feat_mask = (lane < d_real).astype(jnp.float32)
    inv_d = 1.0 / d_real

    def layer_norm(v, g, b):
        # Statistics over the real (unpadded) feature lanes only.
        mean = jnp.sum(v * feat_mask, axis=-1, keepdims=True) * inv_d
        diff = (v - mean) * feat_mask
        var = jnp.sum(diff * diff, axis=-1, keepdims=True) * inv_d
        return diff * lax.rsqrt(var + LN_EPS) * g + b

    # First block: load the embedded input into the resident activation and
    # compute the Gaussian-Fourier time embedding once (reused by all blocks).
    @pl.when(d == 0)
    def _():
        x_sc[...] = x0_ref[...]
        proj = (2.0 * math.pi) * (t_ref[...] * fB_ref[...])   # (L_pad, half_pad)
        temb_sc[...] = jnp.concatenate([jnp.cos(proj), jnp.sin(proj)],
                                       axis=-1).astype(bf16)

    x = x_sc[...]          # (L_pad, D_pad) f32, padded lanes are exactly 0
    ln = ln_ref[0]         # (8, D_pad): rows [g1,b1,g2,b2,g3,b3,0,0]

    # ---------------- attention sub-block (LN1 fused into QKV proj) ----------
    xn = layer_norm(x, ln[0:1, :], ln[1:2, :]).astype(bf16)
    qkv = jnp.dot(xn, wqkv_ref[0], preferred_element_type=jnp.float32) + bqkv_ref[0]
    q = qkv[:, 0 * D_pad:1 * D_pad]
    k = qkv[:, 1 * D_pad:2 * D_pad]
    v = qkv[:, 2 * D_pad:3 * D_pad]

    # add_bias_kv=True: the extra key/value row lives at sequence index seq_len.
    kvb = kvb_ref[0]                                    # (2, D_pad): [bias_k; bias_v]
    row = lax.broadcasted_iota(jnp.int32, (L_pad, 1), 0)
    is_bias_row = row == seq_len
    k = jnp.where(is_bias_row, kvb[0:1, :], k).astype(bf16)
    v = jnp.where(is_bias_row, kvb[1:2, :], v).astype(bf16)

    # Valid keys: the seq_len real rows plus the bias_kv row; padded rows masked.
    key_ok = lax.broadcasted_iota(jnp.int32, (L_pad, L_pad), 1) <= seq_len
    scale = 1.0 / math.sqrt(head_dim)

    # Per-head attention via lane masks (heads stay in their original lanes).
    attn = jnp.zeros((L_pad, D_pad), jnp.float32)
    for h in range(num_heads):
        lo = h * head_dim
        hmask = ((lane >= lo) & (lane < lo + head_dim)).astype(jnp.float32)
        qh = (q * hmask).astype(bf16)                       # zero outside head h
        s = lax.dot_general(qh, k, (((1,), (1,)), ((), ())),
                            preferred_element_type=jnp.float32) * scale
        s = jnp.where(key_ok, s, -1e30)
        p = jnp.exp(s - jnp.max(s, axis=-1, keepdims=True))
        p = p * pl.reciprocal(jnp.sum(p, axis=-1, keepdims=True), approx=True)
        vh = v * hmask.astype(bf16)                         # head h's output lanes
        attn = attn + jnp.dot(p.astype(bf16), vh,
                              preferred_element_type=jnp.float32)

    x_attn = jnp.dot(attn.astype(bf16), wout_ref[0],
                     preferred_element_type=jnp.float32) + bout_ref[0]
    x2 = layer_norm(x + x_attn, ln[2:3, :], ln[3:4, :])

    # ---------------- MLP + time-context sub-block ---------------------------
    h1 = jnp.maximum(
        jnp.dot(x2.astype(bf16), wm1_ref[0], preferred_element_type=jnp.float32)
        + bm1_ref[0], 0.0)
    x_mlp = jnp.dot(h1.astype(bf16), wm2_ref[0],
                    preferred_element_type=jnp.float32) + bm2_ref[0]
    x_mlp = x_mlp + jnp.dot(temb_sc[...], wctx_ref[0],
                            preferred_element_type=jnp.float32) + bctx_ref[0]

    x_new = layer_norm(x2 + x_mlp, ln[4:5, :], ln[5:6, :])
    x_sc[...] = x_new

    # Final linear layer, only on the last block (lane-dense padded output).
    @pl.when(d == pl.num_programs(0) - 1)
    def _():
        o_ref[...] = (jnp.dot(x_new.astype(bf16), wfin_ref[...],
                              preferred_element_type=jnp.float32) + bfin_ref[...])


# ----------------------------------------------------------------------------
# Parameters (torch-layout init) and packing into the padded kernel layout.
# ----------------------------------------------------------------------------
def init_params(key, nodes, hidden, depth, num_heads, t_dim, mlp_ratio):
    D = 3 * nodes * hidden
    keys = iter(jax.random.split(key, 8 + depth * 8))

    def nrm(shape, std=0.02):
        return std * jax.random.normal(next(keys), shape, jnp.float32)

    params = {
        "id_table": nrm((nodes, hidden), 1.0),        # embedding_net_id.weight
        "cond_emb": nrm((hidden,), 0.5),              # condition_embedding
        "fourier_B": nrm((t_dim // 2, 1), 30.0),      # GaussianFourierEmbedding.B
        "final_w": nrm((D, nodes)),                   # stored (in, out)
        "final_b": jnp.zeros((nodes,), jnp.float32),
        "blocks": [],
    }
    for _ in range(depth):
        blk = {
            "norm1_g": jnp.ones((D,), jnp.float32), "norm1_b": jnp.zeros((D,), jnp.float32),
            "norm2_g": jnp.ones((D,), jnp.float32), "norm2_b": jnp.zeros((D,), jnp.float32),
            "norm3_g": jnp.ones((D,), jnp.float32), "norm3_b": jnp.zeros((D,), jnp.float32),
            "in_proj_w": nrm((D, 3 * D)),             # columns = [q | k | v], (in, out)
            "in_proj_b": jnp.zeros((3 * D,), jnp.float32),
            "bias_k": nrm((1, D)),
            "bias_v": nrm((1, D)),
            "out_proj_w": nrm((D, D)),                # (in, out)
            "out_proj_b": jnp.zeros((D,), jnp.float32),
            "ctx_w": nrm((t_dim, D)),                 # (in, out)
            "ctx_b": jnp.zeros((D,), jnp.float32),
            "mlp_w1": nrm((D, mlp_ratio * D)),
            "mlp_b1": jnp.zeros((mlp_ratio * D,), jnp.float32),
            "mlp_w2": nrm((mlp_ratio * D, D)),
            "mlp_b2": jnp.zeros((D,), jnp.float32),
        }
        params["blocks"].append(blk)
    return params


def pack_params(params, *, nodes, hidden, num_heads, t_dim, mlp_ratio):
    """Pad torch-layout params into the lane-dense kernel layout."""
    f32, bf16 = jnp.float32, jnp.bfloat16
    D = 3 * nodes * hidden
    hd = D // num_heads
    D_pad = _round_up(D, 128)
    H = mlp_ratio * D
    H_pad = _round_up(H, 128)
    half = t_dim // 2
    half_pad = _round_up(half, 64)
    T_pad = 2 * half_pad
    nodes_pad = _round_up(nodes, 128)
    depth = len(params["blocks"])

    def pad2(a, r, c, dtype=f32):
        out = jnp.zeros((r, c), dtype)
        return out.at[:a.shape[0], :a.shape[1]].set(a.astype(dtype))

    ln_s, wqkv_s, bqkv_s, kvb_s = [], [], [], []
    wout_s, bout_s = [], []
    wm1_s, bm1_s, wm2_s, bm2_s, wctx_s, bctx_s = ([] for _ in range(6))

    for blk in params["blocks"]:
        ln = jnp.zeros((8, D_pad), f32)
        ln = ln.at[0, :D].set(blk["norm1_g"]).at[1, :D].set(blk["norm1_b"])
        ln = ln.at[2, :D].set(blk["norm2_g"]).at[3, :D].set(blk["norm2_b"])
        ln = ln.at[4, :D].set(blk["norm3_g"]).at[5, :D].set(blk["norm3_b"])
        ln_s.append(ln)

        wq = blk["in_proj_w"][:, :D]
        wk = blk["in_proj_w"][:, D:2 * D]
        wv = blk["in_proj_w"][:, 2 * D:]
        wqkv_s.append(jnp.concatenate([pad2(wq, D_pad, D_pad, bf16),
                                       pad2(wk, D_pad, D_pad, bf16),
                                       pad2(wv, D_pad, D_pad, bf16)], axis=1))
        bq = blk["in_proj_b"][:D]
        bk = blk["in_proj_b"][D:2 * D]
        bv = blk["in_proj_b"][2 * D:]
        bqkv_s.append(jnp.concatenate([pad2(bq.reshape(1, D), 1, D_pad),
                                       pad2(bk.reshape(1, D), 1, D_pad),
                                       pad2(bv.reshape(1, D), 1, D_pad)], axis=1))

        kvb_s.append(jnp.concatenate([pad2(blk["bias_k"], 1, D_pad),
                                      pad2(blk["bias_v"], 1, D_pad)], axis=0))

        wout_s.append(pad2(blk["out_proj_w"], D_pad, D_pad, bf16))
        bout_s.append(pad2(blk["out_proj_b"].reshape(1, D), 1, D_pad))

        wm1_s.append(pad2(blk["mlp_w1"], D_pad, H_pad, bf16))
        bm1_s.append(pad2(blk["mlp_b1"].reshape(1, H), 1, H_pad))
        wm2_s.append(pad2(blk["mlp_w2"], H_pad, D_pad, bf16))
        bm2_s.append(pad2(blk["mlp_b2"].reshape(1, D), 1, D_pad))

        # Fourier layout: cos features in lanes [0, half_pad), sin in [half_pad, T_pad).
        wctx = jnp.zeros((T_pad, D_pad), bf16)
        wctx = wctx.at[:half, :D].set(blk["ctx_w"][:half].astype(bf16))
        wctx = wctx.at[half_pad:half_pad + half, :D].set(blk["ctx_w"][half:].astype(bf16))
        wctx_s.append(wctx)
        bctx_s.append(pad2(blk["ctx_b"].reshape(1, D), 1, D_pad))

    fB = jnp.zeros((1, half_pad), f32).at[0, :half].set(params["fourier_B"][:, 0])

    return dict(
        cfg=dict(D=D, D_pad=D_pad, hd=hd, H_pad=H_pad,
                 half_pad=half_pad, T_pad=T_pad, nodes_pad=nodes_pad,
                 num_heads=num_heads, depth=depth, nodes=nodes),
        id_table=params["id_table"], cond_emb=params["cond_emb"], fourier_B=fB,
        ln=jnp.stack(ln_s), wqkv=jnp.stack(wqkv_s), bqkv=jnp.stack(bqkv_s),
        kvb=jnp.stack(kvb_s), wout=jnp.stack(wout_s), bout=jnp.stack(bout_s),
        wm1=jnp.stack(wm1_s), bm1=jnp.stack(bm1_s),
        wm2=jnp.stack(wm2_s), bm2=jnp.stack(bm2_s),
        wctx=jnp.stack(wctx_s), bctx=jnp.stack(bctx_s),
        wfin=pad2(params["final_w"], D_pad, nodes_pad, bf16),
        bfin=pad2(params["final_b"].reshape(1, nodes), 1, nodes_pad),
    )


# ----------------------------------------------------------------------------
# Input embedding (pure broadcast/concat layout op — kept in plain JAX).
# ----------------------------------------------------------------------------
def input_embed(x, cond_mask, id_table, cond_emb):
    B, N = x.shape
    Hh = id_table.shape[1]
    value_e = jnp.broadcast_to(x[:, :, None], (B, N, Hh))
    id_e = jnp.broadcast_to(id_table[None], (B, N, Hh))
    cond_e = cond_emb.reshape(1, 1, Hh) * cond_mask[:, :, None]
    return jnp.concatenate([value_e, id_e, cond_e], axis=-1).reshape(B, 3 * N * Hh)


# ----------------------------------------------------------------------------
# Forward: one fused pallas_call for the whole transformer.
# ----------------------------------------------------------------------------
def transformer_forward(packed, x, c, t):
    cfg = packed["cfg"]
    B, nodes = x.shape
    D, D_pad = cfg["D"], cfg["D_pad"]
    H_pad, T_pad, half_pad = cfg["H_pad"], cfg["T_pad"], cfg["half_pad"]
    nodes_pad, depth = cfg["nodes_pad"], cfg["depth"]
    # One extra row reserved for the add_bias_kv key/value, rounded to sublanes.
    L_pad = _round_up(B + 1, 8)

    xe = input_embed(x, c, packed["id_table"], packed["cond_emb"])      # (B, D)
    xe_p = jnp.zeros((L_pad, D_pad), jnp.float32).at[:B, :D].set(xe)
    t_p = jnp.zeros((L_pad, 1), jnp.float32).at[:B, :].set(t)

    kernel = partial(_fused_model_kernel,
                     num_heads=cfg["num_heads"], head_dim=cfg["hd"],
                     d_real=D, seq_len=B)

    def rep(shape):       # replicated across blocks (same tile every grid step)
        return pl.BlockSpec(shape, lambda d, n=len(shape): (0,) * n)

    def per_blk(shape):   # per-transformer-block stacked weights
        return pl.BlockSpec((1,) + shape, lambda d: (d, 0, 0))

    out = pl.pallas_call(
        kernel,
        out_shape=jax.ShapeDtypeStruct((L_pad, nodes_pad), jnp.float32),
        grid=(depth,),
        in_specs=[
            rep((L_pad, 1)),                 # t
            rep((1, half_pad)),              # Fourier B (padded)
            rep((L_pad, D_pad)),             # embedded input
            per_blk((8, D_pad)),             # LN gamma/beta stack
            per_blk((D_pad, 3 * D_pad)),     # qkv weight (bf16)
            per_blk((1, 3 * D_pad)),         # qkv bias
            per_blk((2, D_pad)),             # bias_k / bias_v
            per_blk((D_pad, D_pad)),         # out-proj weight (bf16)
            per_blk((1, D_pad)),             # out-proj bias
            per_blk((D_pad, H_pad)),         # mlp w1 (bf16)
            per_blk((1, H_pad)),             # mlp b1
            per_blk((H_pad, D_pad)),         # mlp w2 (bf16)
            per_blk((1, D_pad)),             # mlp b2
            per_blk((T_pad, D_pad)),         # context weight (bf16)
            per_blk((1, D_pad)),             # context bias
            rep((D_pad, nodes_pad)),         # final weight (bf16)
            rep((1, nodes_pad)),             # final bias
        ],
        out_specs=pl.BlockSpec((L_pad, nodes_pad), lambda d: (0, 0)),
        scratch_shapes=[pltpu.VMEM((L_pad, D_pad), jnp.float32),    # resident activation
                        pltpu.VMEM((L_pad, T_pad), jnp.bfloat16)],  # cached time embed
        compiler_params=pltpu.CompilerParams(dimension_semantics=("arbitrary",)),
    )(t_p, packed["fourier_B"], xe_p, packed["ln"],
      packed["wqkv"], packed["bqkv"], packed["kvb"],
      packed["wout"], packed["bout"],
      packed["wm1"], packed["bm1"], packed["wm2"], packed["bm2"],
      packed["wctx"], packed["bctx"],
      packed["wfin"], packed["bfin"])

    return out[:B, :nodes]


if __name__ == "__main__":
    nodes_size, hidden_size, depth, num_heads, t_dim, mlp_ratio = 4, 8, 2, 4, 8, 4
    batch = 2

    key = jax.random.PRNGKey(0)
    kp, kx, kc, kt = jax.random.split(key, 4)

    params = init_params(kp, nodes_size, hidden_size, depth, num_heads, t_dim, mlp_ratio)
    packed = pack_params(params, nodes=nodes_size, hidden=hidden_size,
                         num_heads=num_heads, t_dim=t_dim, mlp_ratio=mlp_ratio)

    x = jax.random.normal(kx, (batch, nodes_size), jnp.float32)
    c = (jax.random.uniform(kc, (batch, nodes_size)) > 0.5).astype(jnp.float32)
    t = jax.random.uniform(kt, (batch, 1), jnp.float32)

    fwd = jax.jit(partial(transformer_forward, packed))
    out = jax.block_until_ready(fwd(x, c, t))
    assert out.shape == (batch, nodes_size) and out.dtype == jnp.float32
    assert bool(jnp.all(jnp.isfinite(out)))
    print("KERNEL_OK")
</pallas_src>

<mosaic_0001>
module attributes {stable_mosaic.version = 11 : i64} {
  func.func @_fused_model_kernel(%arg0: i32, %arg1: memref<8x1xf32, #tpu.memory_space<vmem>>, %arg2: memref<1x64xf32, #tpu.memory_space<vmem>>, %arg3: memref<8x128xf32, #tpu.memory_space<vmem>>, %arg4: memref<1x8x128xf32, #tpu.memory_space<vmem>>, %arg5: memref<1x128x384xbf16, #tpu.memory_space<vmem>>, %arg6: memref<1x1x384xf32, #tpu.memory_space<vmem>>, %arg7: memref<1x2x128xf32, #tpu.memory_space<vmem>>, %arg8: memref<1x128x128xbf16, #tpu.memory_space<vmem>>, %arg9: memref<1x1x128xf32, #tpu.memory_space<vmem>>, %arg10: memref<1x128x384xbf16, #tpu.memory_space<vmem>>, %arg11: memref<1x1x384xf32, #tpu.memory_space<vmem>>, %arg12: memref<1x384x128xbf16, #tpu.memory_space<vmem>>, %arg13: memref<1x1x128xf32, #tpu.memory_space<vmem>>, %arg14: memref<1x128x128xbf16, #tpu.memory_space<vmem>>, %arg15: memref<1x1x128xf32, #tpu.memory_space<vmem>>, %arg16: memref<128x128xbf16, #tpu.memory_space<vmem>>, %arg17: memref<1x128xf32, #tpu.memory_space<vmem>>, %arg18: memref<8x128xf32, #tpu.memory_space<vmem>>, %arg19: memref<8x128xf32, #tpu.memory_space<vmem>>, %arg20: memref<8x128xbf16, #tpu.memory_space<vmem>>) attributes {dimension_semantics = [#tpu.dimension_semantics<arbitrary>], iteration_bounds = array<i64: 2>, scalar_prefetch = 0 : i64, scratch_operands = 2 : i64, tpu.core_type = #tpu.core_type<tc>, window_params = [{pipeline_mode = #tpu.pipeline_mode<synchronous>, transform_indices = @transform_0, window_bounds = array<i64: 8, 1>}, {pipeline_mode = #tpu.pipeline_mode<synchronous>, transform_indices = @transform_1, window_bounds = array<i64: 1, 64>}, {pipeline_mode = #tpu.pipeline_mode<synchronous>, transform_indices = @transform_2, window_bounds = array<i64: 8, 128>}, {transform_indices = @transform_3, window_bounds = array<i64: 1, 8, 128>}, {transform_indices = @transform_4, window_bounds = array<i64: 1, 128, 384>}, {transform_indices = @transform_5, window_bounds = array<i64: 1, 1, 384>}, {transform_indices = @transform_6, window_bounds = array<i64: 1, 2, 128>}, {transform_indices = @transform_7, window_bounds = array<i64: 1, 128, 128>}, {transform_indices = @transform_8, window_bounds = array<i64: 1, 1, 128>}, {transform_indices = @transform_9, window_bounds = array<i64: 1, 128, 384>}, {transform_indices = @transform_10, window_bounds = array<i64: 1, 1, 384>}, {transform_indices = @transform_11, window_bounds = array<i64: 1, 384, 128>}, {transform_indices = @transform_12, window_bounds = array<i64: 1, 1, 128>}, {transform_indices = @transform_13, window_bounds = array<i64: 1, 128, 128>}, {transform_indices = @transform_14, window_bounds = array<i64: 1, 1, 128>}, {pipeline_mode = #tpu.pipeline_mode<synchronous>, transform_indices = @transform_15, window_bounds = array<i64: 128, 128>}, {pipeline_mode = #tpu.pipeline_mode<synchronous>, transform_indices = @transform_16, window_bounds = array<i64: 1, 128>}, {pipeline_mode = #tpu.pipeline_mode<synchronous>, transform_indices = @transform_17, window_bounds = array<i64: 8, 128>}]} {
    %0 = tpu.iota {dimensions = array<i32: 1>} : vector<1x128xi32>
    %c96_i32 = arith.constant 96 : i32
    %1 = vector.broadcast %c96_i32 : i32 to vector<1x128xi32>
    %2 = arith.cmpi slt, %0, %1 : vector<1x128xi32>
    %3 = arith.extui %2 : vector<1x128xi1> to vector<1x128xi32>
    %4 = arith.sitofp %3 : vector<1x128xi32> to vector<1x128xf32>
    %c0_i32 = arith.constant 0 : i32
    %5 = arith.cmpi eq, %arg0, %c0_i32 : i32
    %6 = arith.extui %5 : i1 to i32
    %c0_i32_0 = arith.constant 0 : i32
    %7 = arith.cmpi ne, %6, %c0_i32_0 : i32
    scf.if %7 {
      %c0_94 = arith.constant 0 : index
      %c0_95 = arith.constant 0 : index
      %288 = vector.load %arg3[%c0_94, %c0_95] : memref<8x128xf32, #tpu.memory_space<vmem>>, vector<8x128xf32>
      %c0_96 = arith.constant 0 : index
      %c0_97 = arith.constant 0 : index
      %289 = vector.load %arg19[%c0_96, %c0_97] : memref<8x128xf32, #tpu.memory_space<vmem>>, vector<8x128xf32>
      tpu.vector_store %arg19[%c0_96, %c0_97], %288 {strides = array<i32>} : memref<8x128xf32, #tpu.memory_space<vmem>>, vector<8x128xf32>,
      %c0_98 = arith.constant 0 : index
      %c0_99 = arith.constant 0 : index
      %290 = vector.load %arg1[%c0_98, %c0_99] : memref<8x1xf32, #tpu.memory_space<vmem>>, vector<8x1xf32>
      %c0_100 = arith.constant 0 : index
      %c0_101 = arith.constant 0 : index
      %291 = vector.load %arg2[%c0_100, %c0_101] : memref<1x64xf32, #tpu.memory_space<vmem>>, vector<1x64xf32>
      %292 = vector.broadcast %290 : vector<8x1xf32> to vector<8x64xf32>
      %293 = vector.broadcast %291 : vector<1x64xf32> to vector<8x64xf32>
      %294 = arith.mulf %292, %293 : vector<8x64xf32>
      %cst_102 = arith.constant 6.28318548 : f32
      %295 = vector.broadcast %cst_102 : f32 to vector<8x64xf32>
      %296 = arith.mulf %295, %294 : vector<8x64xf32>
      %297 = math.cos %296 : vector<8x64xf32>
      %298 = math.sin %296 : vector<8x64xf32>
      %299 = tpu.concatenate %297, %298 in 1 : vector<8x64xf32>, vector<8x64xf32> -> vector<8x128xf32>
      %300 = arith.truncf %299 : vector<8x128xf32> to vector<8x128xbf16>
      %c0_103 = arith.constant 0 : index
      %c0_104 = arith.constant 0 : index
      %301 = vector.load %arg20[%c0_103, %c0_104] : memref<8x128xbf16, #tpu.memory_space<vmem>>, vector<8x128xbf16>
      tpu.vector_store %arg20[%c0_103, %c0_104], %300 {strides = array<i32>} : memref<8x128xbf16, #tpu.memory_space<vmem>>, vector<8x128xbf16>,
    } else {
    }
    %c0 = arith.constant 0 : index
    %c0_1 = arith.constant 0 : index
    %8 = vector.load %arg19[%c0, %c0_1] : memref<8x128xf32, #tpu.memory_space<vmem>>, vector<8x128xf32>
    %c0_2 = arith.constant 0 : index
    %c0_3 = arith.constant 0 : index
    %c0_4 = arith.constant 0 : index
    %9 = vector.load %arg4[%c0_2, %c0_3, %c0_4] : memref<1x8x128xf32, #tpu.memory_space<vmem>>, vector<1x8x128xf32>
    %10 = vector.shape_cast %9 : vector<1x8x128xf32> to vector<8x128xf32>
    %11 = vector.extract_strided_slice %10 {offsets = [0, 0], sizes = [1, 128], strides = [1, 1]} : vector<8x128xf32> to vector<1x128xf32>
    %12 = vector.extract_strided_slice %10 {offsets = [1, 0], sizes = [1, 128], strides = [1, 1]} : vector<8x128xf32> to vector<1x128xf32>
    %13 = vector.broadcast %4 : vector<1x128xf32> to vector<8x128xf32>
    %14 = arith.mulf %8, %13 : vector<8x128xf32>
    %cst = arith.constant dense<0.000000e+00> : vector<8xf32>
    %15 = vector.multi_reduction <add>, %14, %cst [1] : vector<8x128xf32> to vector<8xf32>
    %16 = vector.shape_cast %15 : vector<8xf32> to vector<8x1xf32>
    %cst_5 = arith.constant 0.010416667 : f32
    %17 = vector.broadcast %cst_5 : f32 to vector<8x1xf32>
    %18 = arith.mulf %16, %17 : vector<8x1xf32>
    %19 = vector.broadcast %18 : vector<8x1xf32> to vector<8x128xf32>
    %20 = arith.subf %8, %19 : vector<8x128xf32>
    %21 = vector.broadcast %4 : vector<1x128xf32> to vector<8x128xf32>
    %22 = arith.mulf %20, %21 : vector<8x128xf32>
    %23 = arith.mulf %22, %22 : vector<8x128xf32>
    %cst_6 = arith.constant dense<0.000000e+00> : vector<8xf32>
    %24 = vector.multi_reduction <add>, %23, %cst_6 [1] : vector<8x128xf32> to vector<8xf32>
    %25 = vector.shape_cast %24 : vector<8xf32> to vector<8x1xf32>
    %cst_7 = arith.constant 0.010416667 : f32
    %26 = vector.broadcast %cst_7 : f32 to vector<8x1xf32>
    %27 = arith.mulf %25, %26 : vector<8x1xf32>
    %cst_8 = arith.constant 9.99999974E-6 : f32
    %28 = vector.broadcast %cst_8 : f32 to vector<8x1xf32>
    %29 = arith.addf %27, %28 : vector<8x1xf32>
    %30 = math.rsqrt %29 : vector<8x1xf32>
    %31 = vector.broadcast %30 : vector<8x1xf32> to vector<8x128xf32>
    %32 = arith.mulf %22, %31 : vector<8x128xf32>
    %33 = vector.broadcast %11 : vector<1x128xf32> to vector<8x128xf32>
    %34 = arith.mulf %32, %33 : vector<8x128xf32>
    %35 = vector.broadcast %12 : vector<1x128xf32> to vector<8x128xf32>
    %36 = arith.addf %34, %35 : vector<8x128xf32>
    %37 = arith.truncf %36 : vector<8x128xf32> to vector<8x128xbf16>
    %c0_9 = arith.constant 0 : index
    %c0_10 = arith.constant 0 : index
    %c0_11 = arith.constant 0 : index
    %38 = vector.load %arg5[%c0_9, %c0_10, %c0_11] : memref<1x128x384xbf16, #tpu.memory_space<vmem>>, vector<1x128x384xbf16>
    %39 = vector.shape_cast %38 : vector<1x128x384xbf16> to vector<128x384xbf16>
    %cst_12 = arith.constant dense<0.000000e+00> : vector<8x384xf32>
    %40 = tpu.matmul %37, %39, %cst_12 {dimension_numbers = #tpu.dot_dimension_numbers<[1], [0], [0], [1], [0, 0, 1, 1], [], []>} : vector<8x128xbf16>, vector<128x384xbf16>, vector<8x384xf32> -> vector<8x384xf32>
    %c0_13 = arith.constant 0 : index
    %c0_14 = arith.constant 0 : index
    %c0_15 = arith.constant 0 : index
    %41 = vector.load %arg6[%c0_13, %c0_14, %c0_15] : memref<1x1x384xf32, #tpu.memory_space<vmem>>, vector<1x1x384xf32>
    %42 = vector.shape_cast %41 : vector<1x1x384xf32> to vector<1x384xf32>
    %43 = vector.broadcast %42 : vector<1x384xf32> to vector<8x384xf32>
    %44 = arith.addf %40, %43 : vector<8x384xf32>
    %45 = vector.extract_strided_slice %44 {offsets = [0, 0], sizes = [8, 128], strides = [1, 1]} : vector<8x384xf32> to vector<8x128xf32>
    %46 = vector.extract_strided_slice %44 {offsets = [0, 128], sizes = [8, 128], strides = [1, 1]} : vector<8x384xf32> to vector<8x128xf32>
    %47 = vector.extract_strided_slice %44 {offsets = [0, 256], sizes = [8, 128], strides = [1, 1]} : vector<8x384xf32> to vector<8x128xf32>
    %c0_16 = arith.constant 0 : index
    %c0_17 = arith.constant 0 : index
    %c0_18 = arith.constant 0 : index
    %48 = vector.load %arg7[%c0_16, %c0_17, %c0_18] : memref<1x2x128xf32, #tpu.memory_space<vmem>>, vector<1x2x128xf32>
    %49 = vector.shape_cast %48 : vector<1x2x128xf32> to vector<2x128xf32>
    %50 = tpu.iota {dimensions = array<i32: 0>} : vector<8x1xi32>
    %c2_i32 = arith.constant 2 : i32
    %51 = vector.broadcast %c2_i32 : i32 to vector<8x1xi32>
    %52 = arith.cmpi eq, %50, %51 : vector<8x1xi32>
    %53 = vector.extract_strided_slice %49 {offsets = [0, 0], sizes = [1, 128], strides = [1, 1]} : vector<2x128xf32> to vector<1x128xf32>
    %54 = vector.shape_cast %52 : vector<8x1xi1> to vector<8x1xi1>
    %55 = vector.broadcast %54 : vector<8x1xi1> to vector<8x128xi1>
    %56 = vector.shape_cast %53 : vector<1x128xf32> to vector<1x128xf32>
    %57 = vector.broadcast %56 : vector<1x128xf32> to vector<8x128xf32>
    %58 = arith.select %55, %57, %46 : vector<8x128xi1>, vector<8x128xf32>
    %59 = arith.truncf %58 : vector<8x128xf32> to vector<8x128xbf16>
    %60 = vector.extract_strided_slice %49 {offsets = [1, 0], sizes = [1, 128], strides = [1, 1]} : vector<2x128xf32> to vector<1x128xf32>
    %61 = vector.shape_cast %52 : vector<8x1xi1> to vector<8x1xi1>
    %62 = vector.broadcast %61 : vector<8x1xi1> to vector<8x128xi1>
    %63 = vector.shape_cast %60 : vector<1x128xf32> to vector<1x128xf32>
    %64 = vector.broadcast %63 : vector<1x128xf32> to vector<8x128xf32>
    %65 = arith.select %62, %64, %47 : vector<8x128xi1>, vector<8x128xf32>
    %66 = arith.truncf %65 : vector<8x128xf32> to vector<8x128xbf16>
    %67 = tpu.iota {dimensions = array<i32: 1>} : vector<8x8xi32>
    %c2_i32_19 = arith.constant 2 : i32
    %68 = vector.broadcast %c2_i32_19 : i32 to vector<8x8xi32>
    %69 = arith.cmpi sle, %67, %68 : vector<8x8xi32>
    %cst_20 = arith.constant 0.000000e+00 : f32
    %70 = vector.broadcast %cst_20 : f32 to vector<8x128xf32>
    %c0_i32_21 = arith.constant 0 : i32
    %71 = vector.broadcast %c0_i32_21 : i32 to vector<1x128xi32>
    %72 = arith.cmpi sge, %0, %71 : vector<1x128xi32>
    %c24_i32 = arith.constant 24 : i32
    %73 = vector.broadcast %c24_i32 : i32 to vector<1x128xi32>
    %74 = arith.cmpi slt, %0, %73 : vector<1x128xi32>
    %75 = arith.andi %72, %74 : vector<1x128xi1>
    %76 = arith.extui %75 : vector<1x128xi1> to vector<1x128xi32>
    %77 = arith.sitofp %76 : vector<1x128xi32> to vector<1x128xf32>
    %78 = vector.broadcast %77 : vector<1x128xf32> to vector<8x128xf32>
    %79 = arith.mulf %45, %78 : vector<8x128xf32>
    %80 = arith.truncf %79 : vector<8x128xf32> to vector<8x128xbf16>
    %cst_22 = arith.constant dense<0.000000e+00> : vector<8x8xf32>
    %81 = tpu.matmul %80, %59, %cst_22 {dimension_numbers = #tpu.dot_dimension_numbers<[1], [1], [0], [0], [0, 0, 1, 0], [], []>} : vector<8x128xbf16>, vector<8x128xbf16>, vector<8x8xf32> -> vector<8x8xf32>
    %cst_23 = arith.constant 0.204124153 : f32
    %82 = vector.broadcast %cst_23 : f32 to vector<8x8xf32>
    %83 = arith.mulf %81, %82 : vector<8x8xf32>
    %cst_24 = arith.constant -1.000000e+30 : f32
    %84 = vector.broadcast %cst_24 : f32 to vector<8x8xf32>
    %85 = arith.select %69, %83, %84 : vector<8x8xi1>, vector<8x8xf32>
    %cst_25 = arith.constant dense<0xFF800000> : vector<8xf32>
    %86 = vector.multi_reduction <maximumf>, %85, %cst_25 [1] : vector<8x8xf32> to vector<8xf32>
    %87 = vector.shape_cast %86 : vector<8xf32> to vector<8x1xf32>
    %88 = vector.broadcast %87 : vector<8x1xf32> to vector<8x8xf32>
    %89 = arith.subf %85, %88 : vector<8x8xf32>
    %90 = math.exp %89 : vector<8x8xf32>
    %cst_26 = arith.constant dense<0.000000e+00> : vector<8xf32>
    %91 = vector.multi_reduction <add>, %90, %cst_26 [1] : vector<8x8xf32> to vector<8xf32>
    %92 = vector.shape_cast %91 : vector<8xf32> to vector<8x1xf32>
    %93 = tpu.reciprocal %92 {approx = true} : vector<8x1xf32> -> vector<8x1xf32>
    %94 = vector.broadcast %93 : vector<8x1xf32> to vector<8x8xf32>
    %95 = arith.mulf %90, %94 : vector<8x8xf32>
    %96 = arith.truncf %77 : vector<1x128xf32> to vector<1x128xbf16>
    %97 = vector.broadcast %96 : vector<1x128xbf16> to vector<8x128xbf16>
    %98 = arith.mulf %66, %97 : vector<8x128xbf16>
    %99 = arith.truncf %95 : vector<8x8xf32> to vector<8x8xbf16>
    %cst_27 = arith.constant dense<0.000000e+00> : vector<8x128xf32>
    %100 = tpu.matmul %99, %98, %cst_27 {dimension_numbers = #tpu.dot_dimension_numbers<[1], [0], [0], [1], [0, 0, 1, 1], [], []>} : vector<8x8xbf16>, vector<8x128xbf16>, vector<8x128xf32> -> vector<8x128xf32>
    %101 = arith.addf %70, %100 : vector<8x128xf32>
    %c24_i32_28 = arith.constant 24 : i32
    %102 = vector.broadcast %c24_i32_28 : i32 to vector<1x128xi32>
    %103 = arith.cmpi sge, %0, %102 : vector<1x128xi32>
    %c48_i32 = arith.constant 48 : i32
    %104 = vector.broadcast %c48_i32 : i32 to vector<1x128xi32>
    %105 = arith.cmpi slt, %0, %104 : vector<1x128xi32>
    %106 = arith.andi %103, %105 : vector<1x128xi1>
    %107 = arith.extui %106 : vector<1x128xi1> to vector<1x128xi32>
    %108 = arith.sitofp %107 : vector<1x128xi32> to vector<1x128xf32>
    %109 = vector.broadcast %108 : vector<1x128xf32> to vector<8x128xf32>
    %110 = arith.mulf %45, %109 : vector<8x128xf32>
    %111 = arith.truncf %110 : vector<8x128xf32> to vector<8x128xbf16>
    %cst_29 = arith.constant dense<0.000000e+00> : vector<8x8xf32>
    %112 = tpu.matmul %111, %59, %cst_29 {dimension_numbers = #tpu.dot_dimension_numbers<[1], [1], [0], [0], [0, 0, 1, 0], [], []>} : vector<8x128xbf16>, vector<8x128xbf16>, vector<8x8xf32> -> vector<8x8xf32>
    %cst_30 = arith.constant 0.204124153 : f32
    %113 = vector.broadcast %cst_30 : f32 to vector<8x8xf32>
    %114 = arith.mulf %112, %113 : vector<8x8xf32>
    %cst_31 = arith.constant -1.000000e+30 : f32
    %115 = vector.broadcast %cst_31 : f32 to vector<8x8xf32>
    %116 = arith.select %69, %114, %115 : vector<8x8xi1>, vector<8x8xf32>
    %cst_32 = arith.constant dense<0xFF800000> : vector<8xf32>
    %117 = vector.multi_reduction <maximumf>, %116, %cst_32 [1] : vector<8x8xf32> to vector<8xf32>
    %118 = vector.shape_cast %117 : vector<8xf32> to vector<8x1xf32>
    %119 = vector.broadcast %118 : vector<8x1xf32> to vector<8x8xf32>
    %120 = arith.subf %116, %119 : vector<8x8xf32>
    %121 = math.exp %120 : vector<8x8xf32>
    %cst_33 = arith.constant dense<0.000000e+00> : vector<8xf32>
    %122 = vector.multi_reduction <add>, %121, %cst_33 [1] : vector<8x8xf32> to vector<8xf32>
    %123 = vector.shape_cast %122 : vector<8xf32> to vector<8x1xf32>
    %124 = tpu.reciprocal %123 {approx = true} : vector<8x1xf32> -> vector<8x1xf32>
    %125 = vector.broadcast %124 : vector<8x1xf32> to vector<8x8xf32>
    %126 = arith.mulf %121, %125 : vector<8x8xf32>
    %127 = arith.truncf %108 : vector<1x128xf32> to vector<1x128xbf16>
    %128 = vector.broadcast %127 : vector<1x128xbf16> to vector<8x128xbf16>
    %129 = arith.mulf %66, %128 : vector<8x128xbf16>
    %130 = arith.truncf %126 : vector<8x8xf32> to vector<8x8xbf16>
    %cst_34 = arith.constant dense<0.000000e+00> : vector<8x128xf32>
    %131 = tpu.matmul %130, %129, %cst_34 {dimension_numbers = #tpu.dot_dimension_numbers<[1], [0], [0], [1], [0, 0, 1, 1], [], []>} : vector<8x8xbf16>, vector<8x128xbf16>, vector<8x128xf32> -> vector<8x128xf32>
    %132 = arith.addf %101, %131 : vector<8x128xf32>
    %c48_i32_35 = arith.constant 48 : i32
    %133 = vector.broadcast %c48_i32_35 : i32 to vector<1x128xi32>
    %134 = arith.cmpi sge, %0, %133 : vector<1x128xi32>
    %c72_i32 = arith.constant 72 : i32
    %135 = vector.broadcast %c72_i32 : i32 to vector<1x128xi32>
    %136 = arith.cmpi slt, %0, %135 : vector<1x128xi32>
    %137 = arith.andi %134, %136 : vector<1x128xi1>
    %138 = arith.extui %137 : vector<1x128xi1> to vector<1x128xi32>
    %139 = arith.sitofp %138 : vector<1x128xi32> to vector<1x128xf32>
    %140 = vector.broadcast %139 : vector<1x128xf32> to vector<8x128xf32>
    %141 = arith.mulf %45, %140 : vector<8x128xf32>
    %142 = arith.truncf %141 : vector<8x128xf32> to vector<8x128xbf16>
    %cst_36 = arith.constant dense<0.000000e+00> : vector<8x8xf32>
    %143 = tpu.matmul %142, %59, %cst_36 {dimension_numbers = #tpu.dot_dimension_numbers<[1], [1], [0], [0], [0, 0, 1, 0], [], []>} : vector<8x128xbf16>, vector<8x128xbf16>, vector<8x8xf32> -> vector<8x8xf32>
    %cst_37 = arith.constant 0.204124153 : f32
    %144 = vector.broadcast %cst_37 : f32 to vector<8x8xf32>
    %145 = arith.mulf %143, %144 : vector<8x8xf32>
    %cst_38 = arith.constant -1.000000e+30 : f32
    %146 = vector.broadcast %cst_38 : f32 to vector<8x8xf32>
    %147 = arith.select %69, %145, %146 : vector<8x8xi1>, vector<8x8xf32>
    %cst_39 = arith.constant dense<0xFF800000> : vector<8xf32>
    %148 = vector.multi_reduction <maximumf>, %147, %cst_39 [1] : vector<8x8xf32> to vector<8xf32>
    %149 = vector.shape_cast %148 : vector<8xf32> to vector<8x1xf32>
    %150 = vector.broadcast %149 : vector<8x1xf32> to vector<8x8xf32>
    %151 = arith.subf %147, %150 : vector<8x8xf32>
    %152 = math.exp %151 : vector<8x8xf32>
    %cst_40 = arith.constant dense<0.000000e+00> : vector<8xf32>
    %153 = vector.multi_reduction <add>, %152, %cst_40 [1] : vector<8x8xf32> to vector<8xf32>
    %154 = vector.shape_cast %153 : vector<8xf32> to vector<8x1xf32>
    %155 = tpu.reciprocal %154 {approx = true} : vector<8x1xf32> -> vector<8x1xf32>
    %156 = vector.broadcast %155 : vector<8x1xf32> to vector<8x8xf32>
    %157 = arith.mulf %152, %156 : vector<8x8xf32>
    %158 = arith.truncf %139 : vector<1x128xf32> to vector<1x128xbf16>
    %159 = vector.broadcast %158 : vector<1x128xbf16> to vector<8x128xbf16>
    %160 = arith.mulf %66, %159 : vector<8x128xbf16>
    %161 = arith.truncf %157 : vector<8x8xf32> to vector<8x8xbf16>
    %cst_41 = arith.constant dense<0.000000e+00> : vector<8x128xf32>
    %162 = tpu.matmul %161, %160, %cst_41 {dimension_numbers = #tpu.dot_dimension_numbers<[1], [0], [0], [1], [0, 0, 1, 1], [], []>} : vector<8x8xbf16>, vector<8x128xbf16>, vector<8x128xf32> -> vector<8x128xf32>
    %163 = arith.addf %132, %162 : vector<8x128xf32>
    %c72_i32_42 = arith.constant 72 : i32
    %164 = vector.broadcast %c72_i32_42 : i32 to vector<1x128xi32>
    %165 = arith.cmpi sge, %0, %164 : vector<1x128xi32>
    %c96_i32_43 = arith.constant 96 : i32
    %166 = vector.broadcast %c96_i32_43 : i32 to vector<1x128xi32>
    %167 = arith.cmpi slt, %0, %166 : vector<1x128xi32>
    %168 = arith.andi %165, %167 : vector<1x128xi1>
    %169 = arith.extui %168 : vector<1x128xi1> to vector<1x128xi32>
    %170 = arith.sitofp %169 : vector<1x128xi32> to vector<1x128xf32>
    %171 = vector.broadcast %170 : vector<1x128xf32> to vector<8x128xf32>
    %172 = arith.mulf %45, %171 : vector<8x128xf32>
    %173 = arith.truncf %172 : vector<8x128xf32> to vector<8x128xbf16>
    %cst_44 = arith.constant dense<0.000000e+00> : vector<8x8xf32>
    %174 = tpu.matmul %173, %59, %cst_44 {dimension_numbers = #tpu.dot_dimension_numbers<[1], [1], [0], [0], [0, 0, 1, 0], [], []>} : vector<8x128xbf16>, vector<8x128xbf16>, vector<8x8xf32> -> vector<8x8xf32>
    %cst_45 = arith.constant 0.204124153 : f32
    %175 = vector.broadcast %cst_45 : f32 to vector<8x8xf32>
    %176 = arith.mulf %174, %175 : vector<8x8xf32>
    %cst_46 = arith.constant -1.000000e+30 : f32
    %177 = vector.broadcast %cst_46 : f32 to vector<8x8xf32>
    %178 = arith.select %69, %176, %177 : vector<8x8xi1>, vector<8x8xf32>
    %cst_47 = arith.constant dense<0xFF800000> : vector<8xf32>
    %179 = vector.multi_reduction <maximumf>, %178, %cst_47 [1] : vector<8x8xf32> to vector<8xf32>
    %180 = vector.shape_cast %179 : vector<8xf32> to vector<8x1xf32>
    %181 = vector.broadcast %180 : vector<8x1xf32> to vector<8x8xf32>
    %182 = arith.subf %178, %181 : vector<8x8xf32>
    %183 = math.exp %182 : vector<8x8xf32>
    %cst_48 = arith.constant dense<0.000000e+00> : vector<8xf32>
    %184 = vector.multi_reduction <add>, %183, %cst_48 [1] : vector<8x8xf32> to vector<8xf32>
    %185 = vector.shape_cast %184 : vector<8xf32> to vector<8x1xf32>
    %186 = tpu.reciprocal %185 {approx = true} : vector<8x1xf32> -> vector<8x1xf32>
    %187 = vector.broadcast %186 : vector<8x1xf32> to vector<8x8xf32>
    %188 = arith.mulf %183, %187 : vector<8x8xf32>
    %189 = arith.truncf %170 : vector<1x128xf32> to vector<1x128xbf16>
    %190 = vector.broadcast %189 : vector<1x128xbf16> to vector<8x128xbf16>
    %191 = arith.mulf %66, %190 : vector<8x128xbf16>
    %192 = arith.truncf %188 : vector<8x8xf32> to vector<8x8xbf16>
    %cst_49 = arith.constant dense<0.000000e+00> : vector<8x128xf32>
    %193 = tpu.matmul %192, %191, %cst_49 {dimension_numbers = #tpu.dot_dimension_numbers<[1], [0], [0], [1], [0, 0, 1, 1], [], []>} : vector<8x8xbf16>, vector<8x128xbf16>, vector<8x128xf32> -> vector<8x128xf32>
    %194 = arith.addf %163, %193 : vector<8x128xf32>
    %195 = arith.truncf %194 : vector<8x128xf32> to vector<8x128xbf16>
    %c0_50 = arith.constant 0 : index
    %c0_51 = arith.constant 0 : index
    %c0_52 = arith.constant 0 : index
    %196 = vector.load %arg8[%c0_50, %c0_51, %c0_52] : memref<1x128x128xbf16, #tpu.memory_space<vmem>>, vector<1x128x128xbf16>
    %197 = vector.shape_cast %196 : vector<1x128x128xbf16> to vector<128x128xbf16>
    %cst_53 = arith.constant dense<0.000000e+00> : vector<8x128xf32>
    %198 = tpu.matmul %195, %197, %cst_53 {dimension_numbers = #tpu.dot_dimension_numbers<[1], [0], [0], [1], [0, 0, 1, 1], [], []>} : vector<8x128xbf16>, vector<128x128xbf16>, vector<8x128xf32> -> vector<8x128xf32>
    %c0_54 = arith.constant 0 : index
    %c0_55 = arith.constant 0 : index
    %c0_56 = arith.constant 0 : index
    %199 = vector.load %arg9[%c0_54, %c0_55, %c0_56] : memref<1x1x128xf32, #tpu.memory_space<vmem>>, vector<1x1x128xf32>
    %200 = vector.shape_cast %199 : vector<1x1x128xf32> to vector<1x128xf32>
    %201 = vector.broadcast %200 : vector<1x128xf32> to vector<8x128xf32>
    %202 = arith.addf %198, %201 : vector<8x128xf32>
    %203 = arith.addf %8, %202 : vector<8x128xf32>
    %204 = vector.extract_strided_slice %10 {offsets = [2, 0], sizes = [1, 128], strides = [1, 1]} : vector<8x128xf32> to vector<1x128xf32>
    %205 = vector.extract_strided_slice %10 {offsets = [3, 0], sizes = [1, 128], strides = [1, 1]} : vector<8x128xf32> to vector<1x128xf32>
    %206 = vector.broadcast %4 : vector<1x128xf32> to vector<8x128xf32>
    %207 = arith.mulf %203, %206 : vector<8x128xf32>
    %cst_57 = arith.constant dense<0.000000e+00> : vector<8xf32>
    %208 = vector.multi_reduction <add>, %207, %cst_57 [1] : vector<8x128xf32> to vector<8xf32>
    %209 = vector.shape_cast %208 : vector<8xf32> to vector<8x1xf32>
    %cst_58 = arith.constant 0.010416667 : f32
    %210 = vector.broadcast %cst_58 : f32 to vector<8x1xf32>
    %211 = arith.mulf %209, %210 : vector<8x1xf32>
    %212 = vector.broadcast %211 : vector<8x1xf32> to vector<8x128xf32>
    %213 = arith.subf %203, %212 : vector<8x128xf32>
    %214 = vector.broadcast %4 : vector<1x128xf32> to vector<8x128xf32>
    %215 = arith.mulf %213, %214 : vector<8x128xf32>
    %216 = arith.mulf %215, %215 : vector<8x128xf32>
    %cst_59 = arith.constant dense<0.000000e+00> : vector<8xf32>
    %217 = vector.multi_reduction <add>, %216, %cst_59 [1] : vector<8x128xf32> to vector<8xf32>
    %218 = vector.shape_cast %217 : vector<8xf32> to vector<8x1xf32>
    %cst_60 = arith.constant 0.010416667 : f32
    %219 = vector.broadcast %cst_60 : f32 to vector<8x1xf32>
    %220 = arith.mulf %218, %219 : vector<8x1xf32>
    %cst_61 = arith.constant 9.99999974E-6 : f32
    %221 = vector.broadcast %cst_61 : f32 to vector<8x1xf32>
    %222 = arith.addf %220, %221 : vector<8x1xf32>
    %223 = math.rsqrt %222 : vector<8x1xf32>
    %224 = vector.broadcast %223 : vector<8x1xf32> to vector<8x128xf32>
    %225 = arith.mulf %215, %224 : vector<8x128xf32>
    %226 = vector.broadcast %204 : vector<1x128xf32> to vector<8x128xf32>
    %227 = arith.mulf %225, %226 : vector<8x128xf32>
    %228 = vector.broadcast %205 : vector<1x128xf32> to vector<8x128xf32>
    %229 = arith.addf %227, %228 : vector<8x128xf32>
    %230 = arith.truncf %229 : vector<8x128xf32> to vector<8x128xbf16>
    %c0_62 = arith.constant 0 : index
    %c0_63 = arith.constant 0 : index
    %c0_64 = arith.constant 0 : index
    %231 = vector.load %arg10[%c0_62, %c0_63, %c0_64] : memref<1x128x384xbf16, #tpu.memory_space<vmem>>, vector<1x128x384xbf16>
    %232 = vector.shape_cast %231 : vector<1x128x384xbf16> to vector<128x384xbf16>
    %cst_65 = arith.constant dense<0.000000e+00> : vector<8x384xf32>
    %233 = tpu.matmul %230, %232, %cst_65 {dimension_numbers = #tpu.dot_dimension_numbers<[1], [0], [0], [1], [0, 0, 1, 1], [], []>} : vector<8x128xbf16>, vector<128x384xbf16>, vector<8x384xf32> -> vector<8x384xf32>
    %c0_66 = arith.constant 0 : index
    %c0_67 = arith.constant 0 : index
    %c0_68 = arith.constant 0 : index
    %234 = vector.load %arg11[%c0_66, %c0_67, %c0_68] : memref<1x1x384xf32, #tpu.memory_space<vmem>>, vector<1x1x384xf32>
    %235 = vector.shape_cast %234 : vector<1x1x384xf32> to vector<1x384xf32>
    %236 = vector.broadcast %235 : vector<1x384xf32> to vector<8x384xf32>
    %237 = arith.addf %233, %236 : vector<8x384xf32>
    %cst_69 = arith.constant 0.000000e+00 : f32
    %238 = vector.broadcast %cst_69 : f32 to vector<8x384xf32>
    %239 = arith.maximumf %237, %238 : vector<8x384xf32>
    %240 = arith.truncf %239 : vector<8x384xf32> to vector<8x384xbf16>
    %c0_70 = arith.constant 0 : index
    %c0_71 = arith.constant 0 : index
    %c0_72 = arith.constant 0 : index
    %241 = vector.load %arg12[%c0_70, %c0_71, %c0_72] : memref<1x384x128xbf16, #tpu.memory_space<vmem>>, vector<1x384x128xbf16>
    %242 = vector.shape_cast %241 : vector<1x384x128xbf16> to vector<384x128xbf16>
    %cst_73 = arith.constant dense<0.000000e+00> : vector<8x128xf32>
    %243 = tpu.matmul %240, %242, %cst_73 {dimension_numbers = #tpu.dot_dimension_numbers<[1], [0], [0], [1], [0, 0, 1, 1], [], []>} : vector<8x384xbf16>, vector<384x128xbf16>, vector<8x128xf32> -> vector<8x128xf32>
    %c0_74 = arith.constant 0 : index
    %c0_75 = arith.constant 0 : index
    %c0_76 = arith.constant 0 : index
    %244 = vector.load %arg13[%c0_74, %c0_75, %c0_76] : memref<1x1x128xf32, #tpu.memory_space<vmem>>, vector<1x1x128xf32>
    %245 = vector.shape_cast %244 : vector<1x1x128xf32> to vector<1x128xf32>
    %246 = vector.broadcast %245 : vector<1x128xf32> to vector<8x128xf32>
    %247 = arith.addf %243, %246 : vector<8x128xf32>
    %c0_77 = arith.constant 0 : index
    %c0_78 = arith.constant 0 : index
    %248 = vector.load %arg20[%c0_77, %c0_78] : memref<8x128xbf16, #tpu.memory_space<vmem>>, vector<8x128xbf16>
    %c0_79 = arith.constant 0 : index
    %c0_80 = arith.constant 0 : index
    %c0_81 = arith.constant 0 : index
    %249 = vector.load %arg14[%c0_79, %c0_80, %c0_81] : memref<1x128x128xbf16, #tpu.memory_space<vmem>>, vector<1x128x128xbf16>
    %250 = vector.shape_cast %249 : vector<1x128x128xbf16> to vector<128x128xbf16>
    %cst_82 = arith.constant dense<0.000000e+00> : vector<8x128xf32>
    %251 = tpu.matmul %248, %250, %cst_82 {dimension_numbers = #tpu.dot_dimension_numbers<[1], [0], [0], [1], [0, 0, 1, 1], [], []>} : vector<8x128xbf16>, vector<128x128xbf16>, vector<8x128xf32> -> vector<8x128xf32>
    %252 = arith.addf %247, %251 : vector<8x128xf32>
    %c0_83 = arith.constant 0 : index
    %c0_84 = arith.constant 0 : index
    %c0_85 = arith.constant 0 : index
    %253 = vector.load %arg15[%c0_83, %c0_84, %c0_85] : memref<1x1x128xf32, #tpu.memory_space<vmem>>, vector<1x1x128xf32>
    %254 = vector.shape_cast %253 : vector<1x1x128xf32> to vector<1x128xf32>
    %255 = vector.broadcast %254 : vector<1x128xf32> to vector<8x128xf32>
    %256 = arith.addf %252, %255 : vector<8x128xf32>
    %257 = arith.addf %229, %256 : vector<8x128xf32>
    %258 = vector.extract_strided_slice %10 {offsets = [4, 0], sizes = [1, 128], strides = [1, 1]} : vector<8x128xf32> to vector<1x128xf32>
    %259 = vector.extract_strided_slice %10 {offsets = [5, 0], sizes = [1, 128], strides = [1, 1]} : vector<8x128xf32> to vector<1x128xf32>
    %260 = vector.broadcast %4 : vector<1x128xf32> to vector<8x128xf32>
    %261 = arith.mulf %257, %260 : vector<8x128xf32>
    %cst_86 = arith.constant dense<0.000000e+00> : vector<8xf32>
    %262 = vector.multi_reduction <add>, %261, %cst_86 [1] : vector<8x128xf32> to vector<8xf32>
    %263 = vector.shape_cast %262 : vector<8xf32> to vector<8x1xf32>
    %cst_87 = arith.constant 0.010416667 : f32
    %264 = vector.broadcast %cst_87 : f32 to vector<8x1xf32>
    %265 = arith.mulf %263, %264 : vector<8x1xf32>
    %266 = vector.broadcast %265 : vector<8x1xf32> to vector<8x128xf32>
    %267 = arith.subf %257, %266 : vector<8x128xf32>
    %268 = vector.broadcast %4 : vector<1x128xf32> to vector<8x128xf32>
    %269 = arith.mulf %267, %268 : vector<8x128xf32>
    %270 = arith.mulf %269, %269 : vector<8x128xf32>
    %cst_88 = arith.constant dense<0.000000e+00> : vector<8xf32>
    %271 = vector.multi_reduction <add>, %270, %cst_88 [1] : vector<8x128xf32> to vector<8xf32>
    %272 = vector.shape_cast %271 : vector<8xf32> to vector<8x1xf32>
    %cst_89 = arith.constant 0.010416667 : f32
    %273 = vector.broadcast %cst_89 : f32 to vector<8x1xf32>
    %274 = arith.mulf %272, %273 : vector<8x1xf32>
    %cst_90 = arith.constant 9.99999974E-6 : f32
    %275 = vector.broadcast %cst_90 : f32 to vector<8x1xf32>
    %276 = arith.addf %274, %275 : vector<8x1xf32>
    %277 = math.rsqrt %276 : vector<8x1xf32>
    %278 = vector.broadcast %277 : vector<8x1xf32> to vector<8x128xf32>
    %279 = arith.mulf %269, %278 : vector<8x128xf32>
    %280 = vector.broadcast %258 : vector<1x128xf32> to vector<8x128xf32>
    %281 = arith.mulf %279, %280 : vector<8x128xf32>
    %282 = vector.broadcast %259 : vector<1x128xf32> to vector<8x128xf32>
    %283 = arith.addf %281, %282 : vector<8x128xf32>
    %c0_91 = arith.constant 0 : index
    %c0_92 = arith.constant 0 : index
    %284 = vector.load %arg19[%c0_91, %c0_92] : memref<8x128xf32, #tpu.memory_space<vmem>>, vector<8x128xf32>
    tpu.vector_store %arg19[%c0_91, %c0_92], %283 {strides = array<i32>} : memref<8x128xf32, #tpu.memory_space<vmem>>, vector<8x128xf32>,
    %c1_i32 = arith.constant 1 : i32
    %285 = arith.cmpi eq, %arg0, %c1_i32 : i32
    %286 = arith.extui %285 : i1 to i32
    %c0_i32_93 = arith.constant 0 : i32
    %287 = arith.cmpi ne, %286, %c0_i32_93 : i32
    scf.if %287 {
      %288 = arith.truncf %283 : vector<8x128xf32> to vector<8x128xbf16>
      %c0_94 = arith.constant 0 : index
      %c0_95 = arith.constant 0 : index
      %289 = vector.load %arg16[%c0_94, %c0_95] : memref<128x128xbf16, #tpu.memory_space<vmem>>, vector<128x128xbf16>
      %cst_96 = arith.constant dense<0.000000e+00> : vector<8x128xf32>
      %290 = tpu.matmul %288, %289, %cst_96 {dimension_numbers = #tpu.dot_dimension_numbers<[1], [0], [0], [1], [0, 0, 1, 1], [], []>} : vector<8x128xbf16>, vector<128x128xbf16>, vector<8x128xf32> -> vector<8x128xf32>
      %c0_97 = arith.constant 0 : index
      %c0_98 = arith.constant 0 : index
      %291 = vector.load %arg17[%c0_97, %c0_98] : memref<1x128xf32, #tpu.memory_space<vmem>>, vector<1x128xf32>
      %292 = vector.broadcast %291 : vector<1x128xf32> to vector<8x128xf32>
      %293 = arith.addf %290, %292 : vector<8x128xf32>
      %c0_99 = arith.constant 0 : index
      %c0_100 = arith.constant 0 : index
      %294 = vector.load %arg18[%c0_99, %c0_100] : memref<8x128xf32, #tpu.memory_space<vmem>>, vector<8x128xf32>
      tpu.vector_store %arg18[%c0_99, %c0_100], %293 {strides = array<i32>} : memref<8x128xf32, #tpu.memory_space<vmem>>, vector<8x128xf32>,
    } else {
    }
    return
  }
  func.func @transform_0(%arg0: i32) -> (i32, i32) {
    %c0_i32 = arith.constant 0 : i32
    %c0_i32_0 = arith.constant 0 : i32
    %c0_i32_1 = arith.constant 0 : i32
    return %c0_i32, %c0_i32_0 : i32, i32
  }
  func.func @transform_1(%arg0: i32) -> (i32, i32) {
    %c0_i32 = arith.constant 0 : i32
    %c0_i32_0 = arith.constant 0 : i32
    %c0_i32_1 = arith.constant 0 : i32
    return %c0_i32, %c0_i32_0 : i32, i32
  }
  func.func @transform_2(%arg0: i32) -> (i32, i32) {
    %c0_i32 = arith.constant 0 : i32
    %c0_i32_0 = arith.constant 0 : i32
    %c0_i32_1 = arith.constant 0 : i32
    return %c0_i32, %c0_i32_0 : i32, i32
  }
  func.func @transform_3(%arg0: i32) -> (i32, i32, i32) {
    %c0_i32 = arith.constant 0 : i32
    %c0_i32_0 = arith.constant 0 : i32
    %c0_i32_1 = arith.constant 0 : i32
    return %arg0, %c0_i32, %c0_i32_0 : i32, i32, i32
  }
  func.func @transform_4(%arg0: i32) -> (i32, i32, i32) {
    %c0_i32 = arith.constant 0 : i32
    %c0_i32_0 = arith.constant 0 : i32
    %c0_i32_1 = arith.constant 0 : i32
    return %arg0, %c0_i32, %c0_i32_0 : i32, i32, i32
  }
  func.func @transform_5(%arg0: i32) -> (i32, i32, i32) {
    %c0_i32 = arith.constant 0 : i32
    %c0_i32_0 = arith.constant 0 : i32
    %c0_i32_1 = arith.constant 0 : i32
    return %arg0, %c0_i32, %c0_i32_0 : i32, i32, i32
  }
  func.func @transform_6(%arg0: i32) -> (i32, i32, i32) {
    %c0_i32 = arith.constant 0 : i32
    %c0_i32_0 = arith.constant 0 : i32
    %c0_i32_1 = arith.constant 0 : i32
    return %arg0, %c0_i32, %c0_i32_0 : i32, i32, i32
  }
  func.func @transform_7(%arg0: i32) -> (i32, i32, i32) {
    %c0_i32 = arith.constant 0 : i32
    %c0_i32_0 = arith.constant 0 : i32
    %c0_i32_1 = arith.constant 0 : i32
    return %arg0, %c0_i32, %c0_i32_0 : i32, i32, i32
  }
  func.func @transform_8(%arg0: i32) -> (i32, i32, i32) {
    %c0_i32 = arith.constant 0 : i32
    %c0_i32_0 = arith.constant 0 : i32
    %c0_i32_1 = arith.constant 0 : i32
    return %arg0, %c0_i32, %c0_i32_0 : i32, i32, i32
  }
  func.func @transform_9(%arg0: i32) -> (i32, i32, i32) {
    %c0_i32 = arith.constant 0 : i32
    %c0_i32_0 = arith.constant 0 : i32
    %c0_i32_1 = arith.constant 0 : i32
    return %arg0, %c0_i32, %c0_i32_0 : i32, i32, i32
  }
  func.func @transform_10(%arg0: i32) -> (i32, i32, i32) {
    %c0_i32 = arith.constant 0 : i32
    %c0_i32_0 = arith.constant 0 : i32
    %c0_i32_1 = arith.constant 0 : i32
    return %arg0, %c0_i32, %c0_i32_0 : i32, i32, i32
  }
  func.func @transform_11(%arg0: i32) -> (i32, i32, i32) {
    %c0_i32 = arith.constant 0 : i32
    %c0_i32_0 = arith.constant 0 : i32
    %c0_i32_1 = arith.constant 0 : i32
    return %arg0, %c0_i32, %c0_i32_0 : i32, i32, i32
  }
  func.func @transform_12(%arg0: i32) -> (i32, i32, i32) {
    %c0_i32 = arith.constant 0 : i32
    %c0_i32_0 = arith.constant 0 : i32
    %c0_i32_1 = arith.constant 0 : i32
    return %arg0, %c0_i32, %c0_i32_0 : i32, i32, i32
  }
  func.func @transform_13(%arg0: i32) -> (i32, i32, i32) {
    %c0_i32 = arith.constant 0 : i32
    %c0_i32_0 = arith.constant 0 : i32
    %c0_i32_1 = arith.constant 0 : i32
    return %arg0, %c0_i32, %c0_i32_0 : i32, i32, i32
  }
  func.func @transform_14(%arg0: i32) -> (i32, i32, i32) {
    %c0_i32 = arith.constant 0 : i32
    %c0_i32_0 = arith.constant 0 : i32
    %c0_i32_1 = arith.constant 0 : i32
    return %arg0, %c0_i32, %c0_i32_0 : i32, i32, i32
  }
  func.func @transform_15(%arg0: i32) -> (i32, i32) {
    %c0_i32 = arith.constant 0 : i32
    %c0_i32_0 = arith.constant 0 : i32
    %c0_i32_1 = arith.constant 0 : i32
    return %c0_i32, %c0_i32_0 : i32, i32
  }
  func.func @transform_16(%arg0: i32) -> (i32, i32) {
    %c0_i32 = arith.constant 0 : i32
    %c0_i32_0 = arith.constant 0 : i32
    %c0_i32_1 = arith.constant 0 : i32
    return %c0_i32, %c0_i32_0 : i32, i32
  }
  func.func @transform_17(%arg0: i32) -> (i32, i32) {
    %c0_i32 = arith.constant 0 : i32
    %c0_i32_0 = arith.constant 0 : i32
    %c0_i32_1 = arith.constant 0 : i32
    return %c0_i32, %c0_i32_0 : i32, i32
  }
}

</mosaic_0001>

<llo_original>
// kernel: transformer_forward.1
$region0: #{transformer_forward.1}
  #allocation0 [shape = 'u32[]', space=smem, size = 0x4, offset = 0x4, fixed_abs, tag = 'smem constant byte address 0x4 - core index']
  #allocation1 [shape = 'u32[72,128]{1,0:T(1,128)}', space=vmem, size = 0x9000, scoped, tag = 'internal scratch']
  #allocation2 [shape = 'f32[8,128]{1,0:T(8,128)}', space=vmem, size = 0x1000, scoped, tag = 'scratch operand']
  #allocation3 [shape = 'bf16[8,128]{1,0:T(8,128)(2,1)}', space=vmem, size = 0x800, scoped, tag = 'scratch operand']
  %s0 = inlined_call_operand.vmem [shape: f32[8,1], index: 0, kind: input, shape index: {}]
  %s1 = inlined_call_operand.vmem [shape: f32[1,64], index: 1, kind: input, shape index: {}]
  %s2 = inlined_call_operand.vmem [shape: f32[8,128], index: 2, kind: input, shape index: {}]
  %s3 = inlined_call_operand.vmem [shape: f32[2,8,128], index: 3, kind: input, shape index: {}]
  %s4 = inlined_call_operand.hbm [shape: bf16[2,128,384], index: 4, kind: input, shape index: {}]
  %s5 = inlined_call_operand.vmem [shape: f32[2,1,384], index: 5, kind: input, shape index: {}, may-alias: {5,10}]
  %s6 = inlined_call_operand.vmem [shape: f32[2,2,128], index: 6, kind: input, shape index: {}]
  %s7 = inlined_call_operand.hbm [shape: bf16[2,128,128], index: 7, kind: input, shape index: {}]
  %s8 = inlined_call_operand.vmem [shape: f32[2,1,128], index: 8, kind: input, shape index: {}, may-alias: {8,12,14}]
  %s9 = inlined_call_operand.hbm [shape: bf16[2,128,384], index: 9, kind: input, shape index: {}]
  %s10 = inlined_call_operand.vmem [shape: f32[2,1,384], index: 10, kind: input, shape index: {}, may-alias: {5,10}]
  %s11 = inlined_call_operand.hbm [shape: bf16[2,384,128], index: 11, kind: input, shape index: {}]
  %s12 = inlined_call_operand.vmem [shape: f32[2,1,128], index: 12, kind: input, shape index: {}, may-alias: {8,12,14}]
  %s13 = inlined_call_operand.hbm [shape: bf16[2,128,128], index: 13, kind: input, shape index: {}]
  %s14 = inlined_call_operand.vmem [shape: f32[2,1,128], index: 14, kind: input, shape index: {}, may-alias: {8,12,14}]
  %s15 = inlined_call_operand.vmem [shape: bf16[128,128], index: 15, kind: input, shape index: {}]
  %s16 = inlined_call_operand.vmem [shape: f32[1,128], index: 16, kind: input, shape index: {}]
  %s17 = inlined_call_operand.vmem [shape: f32[8,128], index: 17, kind: output, shape index: {}]
  %s18 = sld [smem:[#allocation0]]
  $region129: #{transformer_forward.1} parent=0
    _
  %s20 = ssub.s32 1, %s18
  %s21 = scalar_select 0, %s20, %s18
  $region1: #{transformer_forward.1} parent=0
    #allocation4 [shape = 'u8[196608]{0}', space=vmem, size = 0x30000, scoped, tag = 'input window, operand 4']
    #allocation5 [shape = 's32[2]{0}', space=sflag, size = 0x8, scoped, tag = 'scoped memory for transformer_forward.1']
    #allocation6 [shape = 'u8[65536]{0}', space=vmem, size = 0x10000, scoped, tag = 'input window, operand 7']
    #allocation7 [shape = 's32[2]{0}', space=sflag, size = 0x8, scoped, tag = 'scoped memory for transformer_forward.1']
    #allocation8 [shape = 'u8[196608]{0}', space=vmem, size = 0x30000, scoped, tag = 'input window, operand 9']
    #allocation9 [shape = 'u8[196608]{0}', space=vmem, size = 0x30000, scoped, tag = 'input window, operand 11']
    #allocation10 [shape = 's32[2]{0}', space=sflag, size = 0x8, scoped, tag = 'scoped memory for transformer_forward.1']
    #allocation11 [shape = 'u8[65536]{0}', space=vmem, size = 0x10000, scoped, tag = 'input window, operand 13']
    %22 = vsyncpa [#allocation5], 0
    %s23 = scalar_lea.sflag [#allocation5], 1
    %24 = vsyncpa %s23, 0
    %25 = vsyncpa [#allocation7], 0
    %s26 = scalar_lea.sflag [#allocation7], 1
    %27 = vsyncpa %s26, 0
    %28 = vsyncpa [#allocation10], 0
    %s29 = scalar_lea.sflag [#allocation10], 1
    %30 = vsyncpa %s29, 0
    loop: start=0, step=1, limit=4
    $region2: #{transformer_forward.1} parent=1 // loop_pre_header
      _
    $region3: #{transformer_forward.1} parent=1 // loop_header
      %s32 = sphi 0, %s36
      %p33 = scmp.ge.s32.totalorder %s32, 4
      %s40 = sphi 0, %s40
      %s42 = sphi 0, %s40
      %s43 = sphi 0, %s42
      %s57 = sphi 0, %s43
      %s61 = sphi 0, %s61
      %s63 = sphi 0, %s61
      %s64 = sphi 0, %s63
      %s78 = sphi 0, %s64
      %s82 = sphi 0, %s82
      %s84 = sphi 0, %s82
      %s85 = sphi 0, %s84
      %s99 = sphi 0, %s85
      %s105 = sphi 0, %s107
      %s108 = sphi 0, %s105
      %s109 = sphi 0, %s108
      %s125 = sphi 0, %s109
      %s131 = sphi 0, %s133
      %s134 = sphi 0, %s131
      %s135 = sphi 0, %s134
      %s151 = sphi 0, %s135
      %s157 = sphi 0, %s159
      %s160 = sphi 0, %s157
      %s161 = sphi 0, %s160
      %s177 = sphi 0, %s161
      %s183 = sphi 0, %s185
      %s186 = sphi 0, %s183
      %s187 = sphi 0, %s186
      %s203 = sphi 0, %s187
      %s209 = sphi 0, %s211
      %s212 = sphi 0, %s209
      %s213 = sphi 0, %s212
      %s229 = sphi 0, %s213
      %s235 = sphi 0, %s237
      %s238 = sphi 0, %s235
      %s239 = sphi 0, %s238
      %s255 = sphi 0, %s239
      %s261 = sphi 0, %s263
      %s264 = sphi 0, %s261
      %s265 = sphi 0, %s264
      %s281 = sphi 0, %s265
      %s287 = sphi 0, %s289
      %s290 = sphi 0, %s287
      %s291 = sphi 0, %s290
      %s307 = sphi 0, %s291
      %s313 = sphi 0, %s315
      %s316 = sphi 0, %s313
      %s317 = sphi 0, %s316
      %s333 = sphi 0, %s317
      %s339 = sphi 0, %s341
      %s342 = sphi 0, %s339
      %s343 = sphi 0, %s342
      %s359 = sphi 0, %s343
      %s365 = sphi 0, %s367
      %s368 = sphi 0, %s365
      %s369 = sphi 0, %s368
      %s385 = sphi 0, %s369
      %s391 = sphi 0, %s393
      %s394 = sphi 0, %s391
      %s395 = sphi 0, %s394
      %s411 = sphi 0, %s395
      %s415 = sphi 0, %s415
      %s417 = sphi 0, %s415
      %s418 = sphi 0, %s417
      %s432 = sphi 0, %s418
      %s436 = sphi 0, %s436
      %s438 = sphi 0, %s436
      %s439 = sphi 0, %s438
      %s453 = sphi 0, %s439
      %s457 = sphi 0, %s457
      %s459 = sphi 0, %s457
      %s460 = sphi 0, %s459
      %s474 = sphi 0, %s460
    $region4: #{transformer_forward.1} parent=1 // loop_header_branch
      %35 = sbr.rel (%p33) target = $region8
    $region5: #{transformer_forward.1} parent=1 // loop_body
      %s37 = ssub.s32 %s32, 1
      %s38 = ssub.s32 %s32, 2
      %s39 = sadd.s32 %s32, 1
      %s41 = sadd.s32 %s40, 1
      %p44 = scmp.eq.s32.totalorder %s32, 1
      %p45 = scmp.ne.s32.totalorder %s40, %s42
      %p46 = scmp.eq.s32.totalorder %s32, 0
      %p47 = por %p45, %p46
      %p48 = scmp.ne.s32.totalorder %s40, %s42
      %p49 = scmp.eq.s32.totalorder %s37, 1
      %p50 = por %p48, %p49
      %p51 = scmp.ne.s32.totalorder %s42, %s43
      %p52 = scmp.eq.s32.totalorder %s37, 0
      %p53 = por %p51, %p52
      %p54 = scmp.ne.s32.totalorder %s42, %s43
      %p55 = scmp.eq.s32.totalorder %s38, 1
      %p56 = por %p54, %p55
      %p58 = scmp.ne.s32.totalorder %s43, %s57
      %p59 = scmp.eq.s32.totalorder %s38, 0
      %p60 = por %p58, %p59
      %s62 = sadd.s32 %s61, 1
      %p65 = scmp.eq.s32.totalorder %s32, 1
      %p66 = scmp.ne.s32.totalorder %s61, %s63
      %p67 = scmp.eq.s32.totalorder %s32, 0
      %p68 = por %p66, %p67
      %p69 = scmp.ne.s32.totalorder %s61, %s63
      %p70 = scmp.eq.s32.totalorder %s37, 1
      %p71 = por %p69, %p70
      %p72 = scmp.ne.s32.totalorder %s63, %s64
      %p73 = scmp.eq.s32.totalorder %s37, 0
      %p74 = por %p72, %p73
      %p75 = scmp.ne.s32.totalorder %s63, %s64
      %p76 = scmp.eq.s32.totalorder %s38, 1
      %p77 = por %p75, %p76
      %p79 = scmp.ne.s32.totalorder %s64, %s78
      %p80 = scmp.eq.s32.totalorder %s38, 0
      %p81 = por %p79, %p80
      %s83 = sadd.s32 %s82, 1
      %p86 = scmp.eq.s32.totalorder %s32, 1
      %p87 = scmp.ne.s32.totalorder %s82, %s84
      %p88 = scmp.eq.s32.totalorder %s32, 0
      %p89 = por %p87, %p88
      %p90 = scmp.ne.s32.totalorder %s82, %s84
      %p91 = scmp.eq.s32.totalorder %s37, 1
      %p92 = por %p90, %p91
      %p93 = scmp.ne.s32.totalorder %s84, %s85
      %p94 = scmp.eq.s32.totalorder %s37, 0
      %p95 = por %p93, %p94
      %p96 = scmp.ne.s32.totalorder %s84, %s85
      %p97 = scmp.eq.s32.totalorder %s38, 1
      %p98 = por %p96, %p97
      %p100 = scmp.ne.s32.totalorder %s85, %s99
      %p101 = scmp.eq.s32.totalorder %s38, 0
      %p102 = por %p100, %p101
      %s103 = ssub.s32 %s32, %s39
      %p104 = scmp.eq.s32.totalorder %s103, 0
      %s106 = sadd.s32 %s105, 1
      %s107 = scalar_select %p104, %s105, %s106
      %p110 = pneg %p104
      %p111 = scmp.eq.s32.totalorder %s32, 1
      %p112 = por %p110, %p111
      %p113 = scmp.ne.s32.totalorder %s105, %s108
      %p114 = scmp.eq.s32.totalorder %s32, 0
      %p115 = por %p113, %p114
      %p116 = scmp.ne.s32.totalorder %s105, %s108
      %p117 = scmp.eq.s32.totalorder %s37, 1
      %p118 = por %p116, %p117
      %p119 = scmp.ne.s32.totalorder %s108, %s109
      %p120 = scmp.eq.s32.totalorder %s37, 0
      %p121 = por %p119, %p120
      %p122 = scmp.ne.s32.totalorder %s108, %s109
      %p123 = scmp.eq.s32.totalorder %s38, 1
      %p124 = por %p122, %p123
      %p126 = scmp.ne.s32.totalorder %s109, %s125
      %p127 = scmp.eq.s32.totalorder %s38, 0
      %p128 = por %p126, %p127
      %s129 = ssub.s32 %s32, %s39
      %p130 = scmp.eq.s32.totalorder %s129, 0
      %s132 = sadd.s32 %s131, 1
      %s133 = scalar_select %p130, %s131, %s132
      %p136 = pneg %p130
      %p137 = scmp.eq.s32.totalorder %s32, 1
      %p138 = por %p136, %p137
      %p139 = scmp.ne.s32.totalorder %s131, %s134
      %p140 = scmp.eq.s32.totalorder %s32, 0
      %p141 = por %p139, %p140
      %p142 = scmp.ne.s32.totalorder %s131, %s134
      %p143 = scmp.eq.s32.totalorder %s37, 1
      %p144 = por %p142, %p143
      %p145 = scmp.ne.s32.totalorder %s134, %s135
      %p146 = scmp.eq.s32.totalorder %s37, 0
      %p147 = por %p145, %p146
      %p148 = scmp.ne.s32.totalorder %s134, %s135
      %p149 = scmp.eq.s32.totalorder %s38, 1
      %p150 = por %p148, %p149
      %p152 = scmp.ne.s32.totalorder %s135, %s151
      %p153 = scmp.eq.s32.totalorder %s38, 0
      %p154 = por %p152, %p153
      %s155 = ssub.s32 %s32, %s39
      %p156 = scmp.eq.s32.totalorder %s155, 0
      %s158 = sadd.s32 %s157, 1
      %s159 = scalar_select %p156, %s157, %s158
      %p162 = pneg %p156
      %p163 = scmp.eq.s32.totalorder %s32, 1
      %p164 = por %p162, %p163
      %p165 = scmp.ne.s32.totalorder %s157, %s160
      %p166 = scmp.eq.s32.totalorder %s32, 0
      %p167 = por %p165, %p166
      %p168 = scmp.ne.s32.totalorder %s157, %s160
      %p169 = scmp.eq.s32.totalorder %s37, 1
      %p170 = por %p168, %p169
      %p171 = scmp.ne.s32.totalorder %s160, %s161
      %p172 = scmp.eq.s32.totalorder %s37, 0
      %p173 = por %p171, %p172
      %p174 = scmp.ne.s32.totalorder %s160, %s161
      %p175 = scmp.eq.s32.totalorder %s38, 1
      %p176 = por %p174, %p175
      %p178 = scmp.ne.s32.totalorder %s161, %s177
      %p179 = scmp.eq.s32.totalorder %s38, 0
      %p180 = por %p178, %p179
      %s181 = ssub.s32 %s32, %s39
      %p182 = scmp.eq.s32.totalorder %s181, 0
      %s184 = sadd.s32 %s183, 1
      %s185 = scalar_select %p182, %s183, %s184
      %p188 = pneg %p182
      %p189 = scmp.eq.s32.totalorder %s32, 1
      %p190 = por %p188, %p189
      %p191 = scmp.ne.s32.totalorder %s183, %s186
      %p192 = scmp.eq.s32.totalorder %s32, 0
      %p193 = por %p191, %p192
      %p194 = scmp.ne.s32.totalorder %s183, %s186
      %p195 = scmp.eq.s32.totalorder %s37, 1
      %p196 = por %p194, %p195
      %p197 = scmp.ne.s32.totalorder %s186, %s187
      %p198 = scmp.eq.s32.totalorder %s37, 0
      %p199 = por %p197, %p198
      %p200 = scmp.ne.s32.totalorder %s186, %s187
      %p201 = scmp.eq.s32.totalorder %s38, 1
      %p202 = por %p200, %p201
      %p204 = scmp.ne.s32.totalorder %s187, %s203
      %p205 = scmp.eq.s32.totalorder %s38, 0
      %p206 = por %p204, %p205
      %s207 = ssub.s32 %s32, %s39
      %p208 = scmp.eq.s32.totalorder %s207, 0
      %s210 = sadd.s32 %s209, 1
      %s211 = scalar_select %p208, %s209, %s210
      %p214 = pneg %p208
      %p215 = scmp.eq.s32.totalorder %s32, 1
      %p216 = por %p214, %p215
      %p217 = scmp.ne.s32.totalorder %s209, %s212
      %p218 = scmp.eq.s32.totalorder %s32, 0
      %p219 = por %p217, %p218
      %p220 = scmp.ne.s32.totalorder %s209, %s212
      %p221 = scmp.eq.s32.totalorder %s37, 1
      %p222 = por %p220, %p221
      %p223 = scmp.ne.s32.totalorder %s212, %s213
      %p224 = scmp.eq.s32.totalorder %s37, 0
      %p225 = por %p223, %p224
      %p226 = scmp.ne.s32.totalorder %s212, %s213
      %p227 = scmp.eq.s32.totalorder %s38, 1
      %p228 = por %p226, %p227
      %p230 = scmp.ne.s32.totalorder %s213, %s229
      %p231 = scmp.eq.s32.totalorder %s38, 0
      %p232 = por %p230, %p231
      %s233 = ssub.s32 %s32, %s39
      %p234 = scmp.eq.s32.totalorder %s233, 0
      %s236 = sadd.s32 %s235, 1
      %s237 = scalar_select %p234, %s235, %s236
      %p240 = pneg %p234
      %p241 = scmp.eq.s32.totalorder %s32, 1
      %p242 = por %p240, %p241
      %p243 = scmp.ne.s32.totalorder %s235, %s238
      %p244 = scmp.eq.s32.totalorder %s32, 0
      %p245 = por %p243, %p244
      %p246 = scmp.ne.s32.totalorder %s235, %s238
      %p247 = scmp.eq.s32.totalorder %s37, 1
      %p248 = por %p246, %p247
      %p249 = scmp.ne.s32.totalorder %s238, %s239
      %p250 = scmp.eq.s32.totalorder %s37, 0
      %p251 = por %p249, %p250
      %p252 = scmp.ne.s32.totalorder %s238, %s239
      %p253 = scmp.eq.s32.totalorder %s38, 1
      %p254 = por %p252, %p253
      %p256 = scmp.ne.s32.totalorder %s239, %s255
      %p257 = scmp.eq.s32.totalorder %s38, 0
      %p258 = por %p256, %p257
      %s259 = ssub.s32 %s32, %s39
      %p260 = scmp.eq.s32.totalorder %s259, 0
      %s262 = sadd.s32 %s261, 1
      %s263 = scalar_select %p260, %s261, %s262
      %p266 = pneg %p260
      %p267 = scmp.eq.s32.totalorder %s32, 1
      %p268 = por %p266, %p267
      %p269 = scmp.ne.s32.totalorder %s261, %s264
      %p270 = scmp.eq.s32.totalorder %s32, 0
      %p271 = por %p269, %p270
      %p272 = scmp.ne.s32.totalorder %s261, %s264
      %p273 = scmp.eq.s32.totalorder %s37, 1
      %p274 = por %p272, %p273
      %p275 = scmp.ne.s32.totalorder %s264, %s265
      %p276 = scmp.eq.s32.totalorder %s37, 0
      %p277 = por %p275, %p276
      %p278 = scmp.ne.s32.totalorder %s264, %s265
      %p279 = scmp.eq.s32.totalorder %s38, 1
      %p280 = por %p278, %p279
      %p282 = scmp.ne.s32.totalorder %s265, %s281
      %p283 = scmp.eq.s32.totalorder %s38, 0
      %p284 = por %p282, %p283
      %s285 = ssub.s32 %s32, %s39
      %p286 = scmp.eq.s32.totalorder %s285, 0
      %s288 = sadd.s32 %s287, 1
      %s289 = scalar_select %p286, %s287, %s288
      %p292 = pneg %p286
      %p293 = scmp.eq.s32.totalorder %s32, 1
      %p294 = por %p292, %p293
      %p295 = scmp.ne.s32.totalorder %s287, %s290
      %p296 = scmp.eq.s32.totalorder %s32, 0
      %p297 = por %p295, %p296
      %p298 = scmp.ne.s32.totalorder %s287, %s290
      %p299 = scmp.eq.s32.totalorder %s37, 1
      %p300 = por %p298, %p299
      %p301 = scmp.ne.s32.totalorder %s290, %s291
      %p302 = scmp.eq.s32.totalorder %s37, 0
      %p303 = por %p301, %p302
      %p304 = scmp.ne.s32.totalorder %s290, %s291
      %p305 = scmp.eq.s32.totalorder %s38, 1
      %p306 = por %p304, %p305
      %p308 = scmp.ne.s32.totalorder %s291, %s307
      %p309 = scmp.eq.s32.totalorder %s38, 0
      %p310 = por %p308, %p309
      %s311 = ssub.s32 %s32, %s39
      %p312 = scmp.eq.s32.totalorder %s311, 0
      %s314 = sadd.s32 %s313, 1
      %s315 = scalar_select %p312, %s313, %s314
      %p318 = pneg %p312
      %p319 = scmp.eq.s32.totalorder %s32, 1
      %p320 = por %p318, %p319
      %p321 = scmp.ne.s32.totalorder %s313, %s316
      %p322 = scmp.eq.s32.totalorder %s32, 0
      %p323 = por %p321, %p322
      %p324 = scmp.ne.s32.totalorder %s313, %s316
      %p325 = scmp.eq.s32.totalorder %s37, 1
      %p326 = por %p324, %p325
      %p327 = scmp.ne.s32.totalorder %s316, %s317
      %p328 = scmp.eq.s32.totalorder %s37, 0
      %p329 = por %p327, %p328
      %p330 = scmp.ne.s32.totalorder %s316, %s317
      %p331 = scmp.eq.s32.totalorder %s38, 1
      %p332 = por %p330, %p331
      %p334 = scmp.ne.s32.totalorder %s317, %s333
      %p335 = scmp.eq.s32.totalorder %s38, 0
      %p336 = por %p334, %p335
      %s337 = ssub.s32 %s32, %s39
      %p338 = scmp.eq.s32.totalorder %s337, 0
      %s340 = sadd.s32 %s339, 1
      %s341 = scalar_select %p338, %s339, %s340
      %p344 = pneg %p338
      %p345 = scmp.eq.s32.totalorder %s32, 1
      %p346 = por %p344, %p345
      %p347 = scmp.ne.s32.totalorder %s339, %s342
      %p348 = scmp.eq.s32.totalorder %s32, 0
      %p349 = por %p347, %p348
      %p350 = scmp.ne.s32.totalorder %s339, %s342
      %p351 = scmp.eq.s32.totalorder %s37, 1
      %p352 = por %p350, %p351
      %p353 = scmp.ne.s32.totalorder %s342, %s343
      %p354 = scmp.eq.s32.totalorder %s37, 0
      %p355 = por %p353, %p354
      %p356 = scmp.ne.s32.totalorder %s342, %s343
      %p357 = scmp.eq.s32.totalorder %s38, 1
      %p358 = por %p356, %p357
      %p360 = scmp.ne.s32.totalorder %s343, %s359
      %p361 = scmp.eq.s32.totalorder %s38, 0
      %p362 = por %p360, %p361
      %s363 = ssub.s32 %s32, %s39
      %p364 = scmp.eq.s32.totalorder %s363, 0
      %s366 = sadd.s32 %s365, 1
      %s367 = scalar_select %p364, %s365, %s366
      %p370 = pneg %p364
      %p371 = scmp.eq.s32.totalorder %s32, 1
      %p372 = por %p370, %p371
      %p373 = scmp.ne.s32.totalorder %s365, %s368
      %p374 = scmp.eq.s32.totalorder %s32, 0
      %p375 = por %p373, %p374
      %p376 = scmp.ne.s32.totalorder %s365, %s368
      %p377 = scmp.eq.s32.totalorder %s37, 1
      %p378 = por %p376, %p377
      %p379 = scmp.ne.s32.totalorder %s368, %s369
      %p380 = scmp.eq.s32.totalorder %s37, 0
      %p381 = por %p379, %p380
      %p382 = scmp.ne.s32.totalorder %s368, %s369
      %p383 = scmp.eq.s32.totalorder %s38, 1
      %p384 = por %p382, %p383
      %p386 = scmp.ne.s32.totalorder %s369, %s385
      %p387 = scmp.eq.s32.totalorder %s38, 0
      %p388 = por %p386, %p387
      %s389 = ssub.s32 %s32, %s39
      %p390 = scmp.eq.s32.totalorder %s389, 0
      %s392 = sadd.s32 %s391, 1
      %s393 = scalar_select %p390, %s391, %s392
      %p396 = pneg %p390
      %p397 = scmp.eq.s32.totalorder %s32, 1
      %p398 = por %p396, %p397
      %p399 = scmp.ne.s32.totalorder %s391, %s394
      %p400 = scmp.eq.s32.totalorder %s32, 0
      %p401 = por %p399, %p400
      %p402 = scmp.ne.s32.totalorder %s391, %s394
      %p403 = scmp.eq.s32.totalorder %s37, 1
      %p404 = por %p402, %p403
      %p405 = scmp.ne.s32.totalorder %s394, %s395
      %p406 = scmp.eq.s32.totalorder %s37, 0
      %p407 = por %p405, %p406
      %p408 = scmp.ne.s32.totalorder %s394, %s395
      %p409 = scmp.eq.s32.totalorder %s38, 1
      %p410 = por %p408, %p409
      %p412 = scmp.ne.s32.totalorder %s395, %s411
      %p413 = scmp.eq.s32.totalorder %s38, 0
      %p414 = por %p412, %p413
      %s416 = sadd.s32 %s415, 1
      %p419 = scmp.eq.s32.totalorder %s32, 1
      %p420 = scmp.ne.s32.totalorder %s415, %s417
      %p421 = scmp.eq.s32.totalorder %s32, 0
      %p422 = por %p420, %p421
      %p423 = scmp.ne.s32.totalorder %s415, %s417
      %p424 = scmp.eq.s32.totalorder %s37, 1
      %p425 = por %p423, %p424
      %p426 = scmp.ne.s32.totalorder %s417, %s418
      %p427 = scmp.eq.s32.totalorder %s37, 0
      %p428 = por %p426, %p427
      %p429 = scmp.ne.s32.totalorder %s417, %s418
      %p430 = scmp.eq.s32.totalorder %s38, 1
      %p431 = por %p429, %p430
      %p433 = scmp.ne.s32.totalorder %s418, %s432
      %p434 = scmp.eq.s32.totalorder %s38, 0
      %p435 = por %p433, %p434
      %s437 = sadd.s32 %s436, 1
      %p440 = scmp.eq.s32.totalorder %s32, 1
      %p441 = scmp.ne.s32.totalorder %s436, %s438
      %p442 = scmp.eq.s32.totalorder %s32, 0
      %p443 = por %p441, %p442
      %p444 = scmp.ne.s32.totalorder %s436, %s438
      %p445 = scmp.eq.s32.totalorder %s37, 1
      %p446 = por %p444, %p445
      %p447 = scmp.ne.s32.totalorder %s438, %s439
      %p448 = scmp.eq.s32.totalorder %s37, 0
      %p449 = por %p447, %p448
      %p450 = scmp.ne.s32.totalorder %s438, %s439
      %p451 = scmp.eq.s32.totalorder %s38, 1
      %p452 = por %p450, %p451
      %p454 = scmp.ne.s32.totalorder %s439, %s453
      %p455 = scmp.eq.s32.totalorder %s38, 0
      %p456 = por %p454, %p455
      %s458 = sadd.s32 %s457, 1
      %p461 = scmp.eq.s32.totalorder %s32, 1
      %p462 = scmp.ne.s32.totalorder %s457, %s459
      %p463 = scmp.eq.s32.totalorder %s32, 0
      %p464 = por %p462, %p463
      %p465 = scmp.ne.s32.totalorder %s457, %s459
      %p466 = scmp.eq.s32.totalorder %s37, 1
      %p467 = por %p465, %p466
      %p468 = scmp.ne.s32.totalorder %s459, %s460
      %p469 = scmp.eq.s32.totalorder %s37, 0
      %p470 = por %p468, %p469
      %p471 = scmp.ne.s32.totalorder %s459, %s460
      %p472 = scmp.eq.s32.totalorder %s38, 1
      %p473 = por %p471, %p472
      %p475 = scmp.ne.s32.totalorder %s460, %s474
      %p476 = scmp.eq.s32.totalorder %s38, 0
      %p477 = por %p475, %p476
      %p478 = scmp.le.s32.totalorder 1, %s32
      %p479 = scmp.lt.s32.totalorder %s32, 3
      %p480 = pnand %p478, %p479
      %p481 = pneg %p480
      // Predicated region
      $region9: #{transformer_forward.1} parent=5 // pred_check
        _
      $region10: #{transformer_forward.1} parent=5 // pred_check_branch
        %483 = sbr.rel (%p480) target = $region12
      $region11: #{transformer_forward.1} parent=5 // pred_region
        %s484 = ssub.s32 %s32, 1
        // Predicated region
        $region13: #{transformer_forward.1} parent=11 // pred_check
          %p485 = pneg %p53
        $region14: #{transformer_forward.1} parent=11 // pred_check_branch
          %487 = sbr.rel (%p485) target = $region16
        $region15: #{transformer_forward.1} parent=11 // pred_region
          _
        $region16: #{transformer_forward.1} parent=11 // pred_fallthru
          _
        // Predicated region
        $region17: #{transformer_forward.1} parent=11 // pred_check
          %p488 = pneg %p74
        $region18: #{transformer_forward.1} parent=11 // pred_check_branch
          %490 = sbr.rel (%p488) target = $region20
        $region19: #{transformer_forward.1} parent=11 // pred_region
          _
        $region20: #{transformer_forward.1} parent=11 // pred_fallthru
          _
        // Predicated region
        $region21: #{transformer_forward.1} parent=11 // pred_check
          %p491 = pneg %p95
        $region22: #{transformer_forward.1} parent=11 // pred_check_branch
          %493 = sbr.rel (%p491) target = $region24
        $region23: #{transformer_forward.1} parent=11 // pred_region
          _
        $region24: #{transformer_forward.1} parent=11 // pred_fallthru
          _
        // Predicated region
        $region25: #{transformer_forward.1} parent=11 // pred_check
          %p494 = pneg %p428
        $region26: #{transformer_forward.1} parent=11 // pred_check_branch
          %496 = sbr.rel (%p494) target = $region28
        $region27: #{transformer_forward.1} parent=11 // pred_region
          _
        $region28: #{transformer_forward.1} parent=11 // pred_fallthru
          _
        // Predicated region
        $region29: #{transformer_forward.1} parent=11 // pred_check
          %p497 = pneg %p449
        $region30: #{transformer_forward.1} parent=11 // pred_check_branch
          %499 = sbr.rel (%p497) target = $region32
        $region31: #{transformer_forward.1} parent=11 // pred_region
          _
        $region32: #{transformer_forward.1} parent=11 // pred_fallthru
          _
      $region12: #{transformer_forward.1} parent=5 // pred_fallthru
        _
      %p500 = scmp.lt.s32.totalorder %s32, 2
      // Predicated region
      $region33: #{transformer_forward.1} parent=5 // pred_check
        %p501 = pneg %p500
      $region34: #{transformer_forward.1} parent=5 // pred_check_branch
        %503 = sbr.rel (%p501) target = $region36
      $region35: #{transformer_forward.1} parent=5 // pred_region
        // Predicated region
        $region37: #{transformer_forward.1} parent=35 // pred_check
          %p504 = pneg %p115
        $region38: #{transformer_forward.1} parent=35 // pred_check_branch
          %506 = sbr.rel (%p504) target = $region40
        $region39: #{transformer_forward.1} parent=35 // pred_region
          %p507 = scmp.lt.s32.totalorder %s32, 1
          %s508 = scalar_select %p507, %s32, 1
          %s509 = smul.addr %s508, 8
          %s510 = scalar_lea.vmem %s3, %s509
        $region40: #{transformer_forward.1} parent=35 // pred_fallthru
          _
        // Predicated region
        $region41: #{transformer_forward.1} parent=35 // pred_check
          %p511 = pneg %p141
        $region42: #{transformer_forward.1} parent=35 // pred_check_branch
          %513 = sbr.rel (%p511) target = $region44
        $region43: #{transformer_forward.1} parent=35 // pred_region
          %s514 = sand.u32 %s131, 1
          %s515 = scalar_lea.sflag [#allocation5], %s514
          %s516 = sand.u32 %s131, 1
          %s517 = smul.addr %s516, 192
          %s518 = scalar_lea.vmem [#allocation4], %s517
          %520 = vsyncadd %s515, 0
          %s521 = smul.addr %s32, 48
          %s522 = smul.addr %s521, 4
          %s523 = scalar_lea.hbm %s4, %s522
          %s524 = sshll.u32 %s523, 4
          %s525 = int_to_ptr.hbm [resolvable:$true] %s524
          %s526 = sshll.u32 %s518, 4
          %s527 = int_to_ptr.vmem [resolvable:$true] %s526
          %532 = dma.hbm_to_vmem [thread:$0]  %s525, 3072, %s527, %s515, 192, 192, 12
        $region44: #{transformer_forward.1} parent=35 // pred_fallthru
          _
        // Predicated region
        $region45: #{transformer_forward.1} parent=35 // pred_check
          %p533 = pneg %p167
        $region46: #{transformer_forward.1} parent=35 // pred_check_branch
          %535 = sbr.rel (%p533) target = $region48
        $region47: #{transformer_forward.1} parent=35 // pred_region
          %p536 = scmp.lt.s32.totalorder %s32, 1
          %s537 = scalar_select %p536, %s32, 1
          %s538 = smul.addr %s537, 3
          %s539 = scalar_lea.vmem %s5, %s538
        $region48: #{transformer_forward.1} parent=35 // pred_fallthru
          _
        // Predicated region
        $region49: #{transformer_forward.1} parent=35 // pred_check
          %p540 = pneg %p193
        $region50: #{transformer_forward.1} parent=35 // pred_check_branch
          %542 = sbr.rel (%p540) target = $region52
        $region51: #{transformer_forward.1} parent=35 // pred_region
          %p543 = scmp.lt.s32.totalorder %s32, 1
          %s544 = scalar_select %p543, %s32, 1
          %s545 = smul.addr %s544, 2
          %s546 = scalar_lea.vmem %s6, %s545
        $region52: #{transformer_forward.1} parent=35 // pred_fallthru
          _
        // Predicated region
        $region53: #{transformer_forward.1} parent=35 // pred_check
          %p547 = pneg %p219
        $region54: #{transformer_forward.1} parent=35 // pred_check_branch
          %549 = sbr.rel (%p547) target = $region56
        $region55: #{transformer_forward.1} parent=35 // pred_region
          %s550 = sand.u32 %s32, 1
          %s551 = scalar_lea.sflag [#allocation7], %s550
          %s552 = sand.u32 %s209, 1
          %s553 = smul.addr %s552, 64
          %s554 = scalar_lea.vmem [#allocation6], %s553
          %556 = vsyncadd %s551, 0
          %s557 = smul.addr %s32, 16
          %s558 = smul.addr %s557, 4
          %s559 = scalar_lea.hbm %s7, %s558
          %s560 = sshll.u32 %s559, 4
          %s561 = int_to_ptr.hbm [resolvable:$true] %s560
          %s562 = sshll.u32 %s554, 4
          %s563 = int_to_ptr.vmem [resolvable:$true] %s562
          %568 = dma.hbm_to_vmem [thread:$0]  %s561, 1024, %s563, %s551, 64, 64, 4
        $region56: #{transformer_forward.1} parent=35 // pred_fallthru
          _
        // Predicated region
        $region57: #{transformer_forward.1} parent=35 // pred_check
          %p569 = pneg %p245
        $region58: #{transformer_forward.1} parent=35 // pred_check_branch
          %571 = sbr.rel (%p569) target = $region60
        $region59: #{transformer_forward.1} parent=35 // pred_region
          %p572 = scmp.lt.s32.totalorder %s32, 1
          %s573 = scalar_select %p572, %s32, 1
          %s574 = scalar_lea.vmem %s8, %s573
        $region60: #{transformer_forward.1} parent=35 // pred_fallthru
          _
        // Predicated region
        $region61: #{transformer_forward.1} parent=35 // pred_check
          %p575 = pneg %p271
        $region62: #{transformer_forward.1} parent=35 // pred_check_branch
          %577 = sbr.rel (%p575) target = $region64
        $region63: #{transformer_forward.1} parent=35 // pred_region
          %s578 = sand.u32 %s32, 1
          %s579 = scalar_lea.sflag [#allocation7], %s578
          %s580 = sand.u32 %s261, 1
          %s581 = smul.addr %s580, 192
          %s582 = scalar_lea.vmem [#allocation8], %s581
          %584 = vsyncadd %s579, 0
          %s585 = smul.addr %s32, 48
          %s586 = smul.addr %s585, 4
          %s587 = scalar_lea.hbm %s9, %s586
          %s588 = sshll.u32 %s587, 4
          %s589 = int_to_ptr.hbm [resolvable:$true] %s588
          %s590 = sshll.u32 %s582, 4
          %s591 = int_to_ptr.vmem [resolvable:$true] %s590
          %596 = dma.hbm_to_vmem [thread:$0]  %s589, 3072, %s591, %s579, 192, 192, 12
        $region64: #{transformer_forward.1} parent=35 // pred_fallthru
          _
        // Predicated region
        $region65: #{transformer_forward.1} parent=35 // pred_check
          %p597 = pneg %p297
        $region66: #{transformer_forward.1} parent=35 // pred_check_branch
          %599 = sbr.rel (%p597) target = $region68
        $region67: #{transformer_forward.1} parent=35 // pred_region
          %p600 = scmp.lt.s32.totalorder %s32, 1
          %s601 = scalar_select %p600, %s32, 1
          %s602 = smul.addr %s601, 3
          %s603 = scalar_lea.vmem %s10, %s602
        $region68: #{transformer_forward.1} parent=35 // pred_fallthru
          _
        // Predicated region
        $region69: #{transformer_forward.1} parent=35 // pred_check
          %p604 = pneg %p323
        $region70: #{transformer_forward.1} parent=35 // pred_check_branch
          %606 = sbr.rel (%p604) target = $region72
        $region71: #{transformer_forward.1} parent=35 // pred_region
          %s607 = sand.u32 %s32, 1
          %s608 = scalar_lea.sflag [#allocation10], %s607
          %s609 = sand.u32 %s313, 1
          %s610 = smul.addr %s609, 192
          %s611 = scalar_lea.vmem [#allocation9], %s610
          %613 = vsyncadd %s608, 0
          %s614 = smul.addr %s32, 48
          %s615 = smul.addr %s614, 4
          %s616 = scalar_lea.hbm %s11, %s615
          %s617 = sshll.u32 %s616, 4
          %s618 = int_to_ptr.hbm [resolvable:$true] %s617
          %s619 = sshll.u32 %s611, 4
          %s620 = int_to_ptr.vmem [resolvable:$true] %s619
          %625 = dma.hbm_to_vmem [thread:$0]  %s618, 3072, %s620, %s608, 64, 64, 4
        $region72: #{transformer_forward.1} parent=35 // pred_fallthru
          _
        // Predicated region
        $region73: #{transformer_forward.1} parent=35 // pred_check
          %p626 = pneg %p349
        $region74: #{transformer_forward.1} parent=35 // pred_check_branch
          %628 = sbr.rel (%p626) target = $region76
        $region75: #{transformer_forward.1} parent=35 // pred_region
          %p629 = scmp.lt.s32.totalorder %s32, 1
          %s630 = scalar_select %p629, %s32, 1
          %s631 = scalar_lea.vmem %s12, %s630
        $region76: #{transformer_forward.1} parent=35 // pred_fallthru
          _
        // Predicated region
        $region77: #{transformer_forward.1} parent=35 // pred_check
          %p632 = pneg %p375
        $region78: #{transformer_forward.1} parent=35 // pred_check_branch
          %634 = sbr.rel (%p632) target = $region80
        $region79: #{transformer_forward.1} parent=35 // pred_region
          %s635 = sand.u32 %s32, 1
          %s636 = scalar_lea.sflag [#allocation10], %s635
          %s637 = sand.u32 %s365, 1
          %s638 = smul.addr %s637, 64
          %s639 = scalar_lea.vmem [#allocation11], %s638
          %641 = vsyncadd %s636, 0
          %s642 = smul.addr %s32, 16
          %s643 = smul.addr %s642, 4
          %s644 = scalar_lea.hbm %s13, %s643
          %s645 = sshll.u32 %s644, 4
          %s646 = int_to_ptr.hbm [resolvable:$true] %s645
          %s647 = sshll.u32 %s639, 4
          %s648 = int_to_ptr.vmem [resolvable:$true] %s647
          %653 = dma.hbm_to_vmem [thread:$0]  %s646, 1024, %s648, %s636, 64, 64, 4
        $region80: #{transformer_forward.1} parent=35 // pred_fallthru
          _
        // Predicated region
        $region81: #{transformer_forward.1} parent=35 // pred_check
          %p654 = pneg %p401
        $region82: #{transformer_forward.1} parent=35 // pred_check_branch
          %656 = sbr.rel (%p654) target = $region84
        $region83: #{transformer_forward.1} parent=35 // pred_region
          %p657 = scmp.lt.s32.totalorder %s32, 1
          %s658 = scalar_select %p657, %s32, 1
          %s659 = scalar_lea.vmem %s14, %s658
        $region84: #{transformer_forward.1} parent=35 // pred_fallthru
          _
      $region36: #{transformer_forward.1} parent=5 // pred_fallthru
        _
      %p660 = scmp.le.s32.totalorder 1, %s32
      %p661 = scmp.lt.s32.totalorder %s32, 3
      %p662 = pnand %p660, %p661
      %p663 = pneg %p662
      // Predicated region
      $region85: #{transformer_forward.1} parent=5 // pred_check
        _
      $region86: #{transformer_forward.1} parent=5 // pred_check_branch
        %665 = sbr.rel (%p662) target = $region88
      $region87: #{transformer_forward.1} parent=5 // pred_region
        %s666 = ssub.s32 %s32, 1
        %s667 = sand.u32 %s134, 1
        %s668 = scalar_lea.sflag [#allocation5], %s667
        %s669 = sand.u32 %s134, 1
        %s670 = smul.addr %s669, 192
        %s671 = scalar_lea.vmem [#allocation4], %s670
        // Predicated region
        $region89: #{transformer_forward.1} parent=87 // pred_check
          %p672 = pneg %p147
        $region90: #{transformer_forward.1} parent=87 // pred_check_branch
          %674 = sbr.rel (%p672) target = $region92
        $region91: #{transformer_forward.1} parent=87 // pred_region
          %676 = dma.done %s668, 3072
        $region92: #{transformer_forward.1} parent=87 // pred_fallthru
          _
        %s677 = sand.u32 %s37, 1
        %s678 = scalar_lea.sflag [#allocation7], %s677
        %s679 = sand.u32 %s212, 1
        %s680 = smul.addr %s679, 64
        %s681 = scalar_lea.vmem [#allocation6], %s680
        // Predicated region
        $region93: #{transformer_forward.1} parent=87 // pred_check
          %p682 = pneg %p225
        $region94: #{transformer_forward.1} parent=87 // pred_check_branch
          %684 = sbr.rel (%p682) target = $region96
        $region95: #{transformer_forward.1} parent=87 // pred_region
          %686 = dma.done %s678, 1024
        $region96: #{transformer_forward.1} parent=87 // pred_fallthru
          _
        %s687 = sand.u32 %s37, 1
        %s688 = scalar_lea.sflag [#allocation7], %s687
        %s689 = sand.u32 %s264, 1
        %s690 = smul.addr %s689, 192
        %s691 = scalar_lea.vmem [#allocation8], %s690
        // Predicated region
        $region97: #{transformer_forward.1} parent=87 // pred_check
          %p692 = pneg %p277
        $region98: #{transformer_forward.1} parent=87 // pred_check_branch
          %694 = sbr.rel (%p692) target = $region100
        $region99: #{transformer_forward.1} parent=87 // pred_region
          %696 = dma.done %s688, 3072
        $region100: #{transformer_forward.1} parent=87 // pred_fallthru
          _
        %s697 = sand.u32 %s37, 1
        %s698 = scalar_lea.sflag [#allocation10], %s697
        %s699 = sand.u32 %s316, 1
        %s700 = smul.addr %s699, 192
        %s701 = scalar_lea.vmem [#allocation9], %s700
        // Predicated region
        $region101: #{transformer_forward.1} parent=87 // pred_check
          %p702 = pneg %p329
        $region102: #{transformer_forward.1} parent=87 // pred_check_branch
          %704 = sbr.rel (%p702) target = $region104
        $region103: #{transformer_forward.1} parent=87 // pred_region
          %706 = dma.done %s698, 3072
        $region104: #{transformer_forward.1} parent=87 // pred_fallthru
          _
        %s707 = sand.u32 %s37, 1
        %s708 = scalar_lea.sflag [#allocation10], %s707
        %s709 = sand.u32 %s368, 1
        %s710 = smul.addr %s709, 64
        %s711 = scalar_lea.vmem [#allocation11], %s710
        // Predicated region
        $region105: #{transformer_forward.1} parent=87 // pred_check
          %p712 = pneg %p381
        $region106: #{transformer_forward.1} parent=87 // pred_check_branch
          %714 = sbr.rel (%p712) target = $region108
        $region107: #{transformer_forward.1} parent=87 // pred_region
          %716 = dma.done %s708, 1024
        $region108: #{transformer_forward.1} parent=87 // pred_fallthru
          _
        %p717 = pneg %p53
        %p718 = pneg %p50
        %p719 = pneg %p74
        %p720 = pneg %p71
        %p721 = pneg %p95
        %p722 = pneg %p92
        %p723 = scmp.lt.s32.totalorder %s37, 1
        %s724 = scalar_select %p723, %s37, 1
        %s725 = smul.addr %s724, 8
        %s726 = scalar_lea.vmem %s3, %s725
        %p727 = pneg %p121
        %p728 = pneg %p118
        %s729 = sand.u32 %s134, 1
        %s730 = scalar_lea.sflag [#allocation5], %s729
        %s731 = sand.u32 %s134, 1
        %s732 = smul.addr %s731, 192
        %s733 = scalar_lea.vmem [#allocation4], %s732
        %p734 = pneg %p147
        %p735 = pneg %p144
        %p736 = scmp.lt.s32.totalorder %s37, 1
        %s737 = scalar_select %p736, %s37, 1
        %s738 = smul.addr %s737, 3
        %s739 = scalar_lea.vmem %s5, %s738
        %p740 = pneg %p173
        %p741 = pneg %p170
        %p742 = scmp.lt.s32.totalorder %s37, 1
        %s743 = scalar_select %p742, %s37, 1
        %s744 = smul.addr %s743, 2
        %s745 = scalar_lea.vmem %s6, %s744
        %p746 = pneg %p199
        %p747 = pneg %p196
        %s748 = sand.u32 %s37, 1
        %s749 = scalar_lea.sflag [#allocation7], %s748
        %s750 = sand.u32 %s212, 1
        %s751 = smul.addr %s750, 64
        %s752 = scalar_lea.vmem [#allocation6], %s751
        %p753 = pneg %p225
        %p754 = pneg %p222
        %p755 = scmp.lt.s32.totalorder %s37, 1
        %s756 = scalar_select %p755, %s37, 1
        %s757 = scalar_lea.vmem %s8, %s756
        %p758 = pneg %p251
        %p759 = pneg %p248
        %s760 = sand.u32 %s37, 1
        %s761 = scalar_lea.sflag [#allocation7], %s760
        %s762 = sand.u32 %s264, 1
        %s763 = smul.addr %s762, 192
        %s764 = scalar_lea.vmem [#allocation8], %s763
        %p765 = pneg %p277
        %p766 = pneg %p274
        %p767 = scmp.lt.s32.totalorder %s37, 1
        %s768 = scalar_select %p767, %s37, 1
        %s769 = smul.addr %s768, 3
        %s770 = scalar_lea.vmem %s10, %s769
        %p771 = pneg %p303
        %p772 = pneg %p300
        %s773 = sand.u32 %s37, 1
        %s774 = scalar_lea.sflag [#allocation10], %s773
        %s775 = sand.u32 %s316, 1
        %s776 = smul.addr %s775, 192
        %s777 = scalar_lea.vmem [#allocation9], %s776
        %p778 = pneg %p329
        %p779 = pneg %p326
        %p780 = scmp.lt.s32.totalorder %s37, 1
        %s781 = scalar_select %p780, %s37, 1
        %s782 = scalar_lea.vmem %s12, %s781
        %p783 = pneg %p355
        %p784 = pneg %p352
        %s785 = sand.u32 %s37, 1
        %s786 = scalar_lea.sflag [#allocation10], %s785
        %s787 = sand.u32 %s368, 1
        %s788 = smul.addr %s787, 64
        %s789 = scalar_lea.vmem [#allocation11], %s788
        %p790 = pneg %p381
        %p791 = pneg %p378
        %p792 = scmp.lt.s32.totalorder %s37, 1
        %s793 = scalar_select %p792, %s37, 1
        %s794 = scalar_lea.vmem %s14, %s793
        %p795 = pneg %p407
        %p796 = pneg %p404
        %p797 = pneg %p428
        %p798 = pneg %p425
        %p799 = pneg %p449
        %p800 = pneg %p446
        %p801 = pneg %p470
        %p802 = pneg %p467
        %p803 = scmp.lt.s32.totalorder %s37, 1
        %s804 = scalar_select %p803, %s37, 1
        %s805 = smul.addr %s804, 8
        %s806 = scalar_lea.vmem %s3, %s805
        %p807 = scmp.lt.s32.totalorder %s37, 1
        %s808 = scalar_select %p807, %s37, 1
        %s809 = smul.addr %s808, 3
        %s810 = scalar_lea.vmem %s5, %s809
        %p811 = scmp.lt.s32.totalorder %s37, 1
        %s812 = scalar_select %p811, %s37, 1
        %s813 = smul.addr %s812, 2
        %s814 = scalar_lea.vmem %s6, %s813
        %p815 = scmp.lt.s32.totalorder %s37, 1
        %s816 = scalar_select %p815, %s37, 1
        %s817 = scalar_lea.vmem %s8, %s816
        %p818 = scmp.lt.s32.totalorder %s37, 1
        %s819 = scalar_select %p818, %s37, 1
        %s820 = smul.addr %s819, 3
        %s821 = scalar_lea.vmem %s10, %s820
        %p822 = scmp.lt.s32.totalorder %s37, 1
        %s823 = scalar_select %p822, %s37, 1
        %s824 = scalar_lea.vmem %s12, %s823
        %p825 = scmp.lt.s32.totalorder %s37, 1
        %s826 = scalar_select %p825, %s37, 1
        %s827 = scalar_lea.vmem %s14, %s826
        %v829 = vlaneseq
        %v830 = vand.u32 %v829, 127
        %vm831 = vcmp.lt.s32.totalorder %v830, 96
        %v832 = vsel %vm831, 1, 0
        %v833 = vcvt.s32.f32 %v832
        %p834 = scmp.eq.s32.totalorder %s37, 0
        // Predicated region
        $region109: #{transformer_forward.1} parent=87 // pred_check
          %p835 = pneg %p834
        $region110: #{transformer_forward.1} parent=87 // pred_check_branch
          %837 = sbr.rel (%p835) target = $region112
        $region111: #{transformer_forward.1} parent=87 // pred_region
          %v838 = vld [vmem:[%s2] sm:$0xff]
          %839 = vst [vmem:[#allocation2] sm:$0xff] %v838
          %v840 = vld [vmem:[%s0] sm:$0xff]
          %v841 = vld [vmem:[%s1] sm:$0x1]
          %843 = vset.pattern.permute.xlu0 0
          %844 = vperm.xlu0 %843, %v840
          %v845 = vpop.permute.xlu0 %844
          %v848 = vperm.slane %v841, 0
          %v850 = vmul.f32 %v845, %v848
          %v851 = vmul.f32 %v850, 6.2831855
          %v852 = vand.u32 2147483647, %v851
          %vm853 = vcmp.le.f32.partialorder %v852, 0.7853982
          %vm854 = vcmp.lt.s32.totalorder %v851, 0
          %v855 = vand.u32 %v851, 2139095040
          %v856 = vshrl.u32 %v855, 23
          %v857 = vsub.s32 %v856, 127
          %v858 = vand.u32 2147483647, %v851
          %v859 = vand.u32 %v858, 8388607
          %v860 = vor.u32 %v859, 8388608
          %v861 = vsub.s32 0, %v860
          %v862 = vadd.s32 %v857, 1
          %vm863 = vcmp.gt.s32.totalorder %v862, 0
          %v864 = vsel %vm863, %v862, 0
          %v865 = vshrl.u32 %v864, 5
          %v866 = vand.u32 %v864, 31
          %v867 = vsub.s32 32, %v866
          %v868 = vshrl.u32 683565275, %v867
          %v869 = vshll.u32 683565275, %v866
          %v870 = vshrl.u32 2475754826, %v867
          %v871 = vor.u32 %v869, %v870
          %v872 = vshll.u32 2475754826, %v866
          %v873 = vshrl.u32 2131351028, %v867
          %v874 = vor.u32 %v872, %v873
          %v875 = vshll.u32 2131351028, %v866
          %v876 = vshrl.u32 2102212464, %v867
          %v877 = vor.u32 %v875, %v876
          %v878 = vshll.u32 2102212464, %v866
          %v879 = vshrl.u32 920167782, %v867
          %v880 = vor.u32 %v878, %v879
          %v881 = vshll.u32 920167782, %v866
          %v882 = vshrl.u32 1326507024, %v867
          %v883 = vor.u32 %v881, %v882
          %vm884 = vcmp.lt.s32.totalorder %v865, 1
          %vm885 = vcmp.lt.s32.totalorder %v865, 2
          %vm886 = vcmp.lt.s32.totalorder %v865, 3
          %vm887 = vcmp.lt.s32.totalorder %v865, 4
          %v888 = vsel %vm884, %v868, %v871
          %v889 = vsel %vm887, %v877, 2102212464
          %v890 = vsel %vm886, %v874, %v889
          %v891 = vsel %vm885, %v888, %v890
          %v892 = vsel %vm884, %v871, %v874
          %v893 = vsel %vm887, %v880, 920167782
          %v894 = vsel %vm886, %v877, %v893
          %v895 = vsel %vm885, %v892, %v894
          %v896 = vsel %vm884, %v874, %v877
          %v897 = vsel %vm887, %v883, 1326507024
          %v898 = vsel %vm886, %v880, %v897
          %v899 = vsel %vm885, %v896, %v898
          %v900 = vshll.u32 %v860, 8
          %v901 = vand.u32 %v900, 65535
          %v902 = vshrl.u32 %v900, 16
          %v903 = vand.u32 %v899, 65535
          %v904 = vshrl.u32 %v899, 16
          %v905 = vmul.u32 %v901, %v903
          %v906 = vmul.u32 %v901, %v904
          %v907 = vmul.u32 %v902, %v903
          %v908 = vmul.u32 %v902, %v904
          %v909 = vshll.u32 %v906, 16
          %v910 = vshrl.u32 %v906, 16
          %v911 = vshll.u32 %v907, 16
          %v912 = vshrl.u32 %v907, 16
          %vm913 = vc.u32 %v905, %v909
          %v914 = vsel %vm913, 1, 0
          %v915 = vadd.s32 %v905, %v909
          %v916 = vadd.s32 %v908, %v914
          %vm917 = vc.u32 %v915, %v911
          %v918 = vsel %vm917, 1, 0
          %v919 = vadd.s32 %v915, %v911
          %v920 = vadd.s32 %v916, %v918
          %v921 = vadd.s32 %v920, %v910
          %v922 = vadd.s32 %v921, %v912
          %v923 = vand.u32 %v900, 65535
          %v924 = vshrl.u32 %v900, 16
          %v925 = vand.u32 %v895, 65535
          %v926 = vshrl.u32 %v895, 16
          %v927 = vmul.u32 %v923, %v925
          %v928 = vmul.u32 %v923, %v926
          %v929 = vmul.u32 %v924, %v925
          %v930 = vmul.u32 %v924, %v926
          %v931 = vshll.u32 %v928, 16
          %v932 = vshrl.u32 %v928, 16
          %v933 = vshll.u32 %v929, 16
          %v934 = vshrl.u32 %v929, 16
          %vm935 = vc.u32 %v927, %v931
          %v936 = vsel %vm935, 1, 0
          %v937 = vadd.s32 %v927, %v931
          %v938 = vadd.s32 %v930, %v936
          %vm939 = vc.u32 %v937, %v933
          %v940 = vsel %vm939, 1, 0
          %v941 = vadd.s32 %v937, %v933
          %v942 = vadd.s32 %v938, %v940
          %v943 = vadd.s32 %v942, %v932
          %v944 = vadd.s32 %v943, %v934
          %v945 = vmul.u32 %v900, %v891
          %v946 = vadd.s32 %v922, %v941
          %vm947 = vc.u32 %v922, %v941
          %v948 = vadd.s32 %v944, 1
          %v949 = vsel %vm947, %v948, %v944
          %v950 = vadd.s32 %v945, %v949
          %v951 = vadd.s32 %v950, 536870912
          %v952 = vshrl.u32 %v951, 30
          %v953 = vshll.u32 %v952, 30
          %v954 = vsub.s32 %v950, %v953
          %vm955 = vcmp.lt.s32.totalorder %v954, 0
          %v956 = vsub.s32 0, %v954
          %v957 = vsel %vm955, %v956, %v954
          %v958 = vclz %v957
          %v959 = vsub.s32 %v958, 2
          %vm960 = vcmp.gt.s32.totalorder 0, %v959
          %v961 = vsel %vm960, 0, %v959
          %v962 = vsub.s32 32, %v961
          %v963 = vshll.u32 %v954, %v961
          %v964 = vshrl.u32 %v946, %v962
          %v965 = vor.u32 %v963, %v964
          %v966 = vsub.s32 4294967266, %v961
          %v967 = vadd.s32 %v966, 127
          %v968 = vshll.u32 %v967, 23
          %v969 = vor.u32 4788187, %v968
          %v970 = vand.u32 2147483647, %v969
          %v972 = vcvt.s32.f32 %v965
          %v973 = vmul.f32 %v972, %v970
          %v974 = vxor.u32 %v973, 2147483648
          %v975 = vsel %vm854, %v974, %v973
          %v976 = vsub.s32 4, %v952
          %v977 = vsel %vm854, %v976, %v952
          %v978 = vsel %vm853, %v851, %v975
          %v979 = vsel %vm853, 0, %v977
          %v980 = vmul.f32 %v978, %v978
          %v981 = vmul.f32 %v980, -0.001358992
          %v982 = vadd.f32 %v981, 0.041655596
          %v983 = vmul.f32 %v980, %v982
          %v984 = vadd.f32 %v983, -0.4999988
          %v985 = vmul.f32 %v980, %v984
          %v986 = vadd.f32 1.0, %v985
          %v987 = vmul.f32 %v978, %v978
          %v988 = vmul.f32 %v987, -0.00019511016
          %v989 = vadd.f32 %v988, 0.008332121
          %v990 = vmul.f32 %v987, %v989
          %v991 = vadd.f32 %v990, -0.16666654
          %v992 = vmul.f32 %v987, %v991
          %v993 = vadd.f32 %v992, 1.0
          %v994 = vmul.f32 %v993, %v978
          %vm995 = vweird.f32 %v851
          %v996 = vand.u32 %v979, 3
          %vm997 = vcmp.lt.s32.totalorder %v996, 2
          %vm998 = vcmp.eq.s32.totalorder %v996, 0
          %v999 = vxor.u32 %v994, 2147483648
          %v1000 = vsel %vm998, %v986, %v999
          %vm1001 = vcmp.eq.s32.totalorder %v996, 2
          %v1002 = vxor.u32 %v986, 2147483648
          %v1003 = vsel %vm1001, %v1002, %v994
          %v1004 = vsel %vm997, %v1000, %v1003
          %v1005 = vsel %vm995, nan, %v1004
          %v1006 = vand.u32 2147483647, %v851
          %vm1007 = vcmp.le.f32.partialorder %v1006, 0.7853982
          %vm1008 = vcmp.lt.s32.totalorder %v851, 0
          %v1009 = vand.u32 %v851, 2139095040
          %v1010 = vshrl.u32 %v1009, 23
          %v1011 = vsub.s32 %v1010, 127
          %v1012 = vand.u32 2147483647, %v851
          %v1013 = vand.u32 %v1012, 8388607
          %v1014 = vor.u32 %v1013, 8388608
          %v1015 = vsub.s32 0, %v1014
          %v1016 = vadd.s32 %v1011, 1
          %vm1017 = vcmp.gt.s32.totalorder %v1016, 0
          %v1018 = vsel %vm1017, %v1016, 0
          %v1019 = vshrl.u32 %v1018, 5
          %v1020 = vand.u32 %v1018, 31
          %v1021 = vsub.s32 32, %v1020
          %v1022 = vshrl.u32 683565275, %v1021
          %v1023 = vshll.u32 683565275, %v1020
          %v1024 = vshrl.u32 2475754826, %v1021
          %v1025 = vor.u32 %v1023, %v1024
          %v1026 = vshll.u32 2475754826, %v1020
          %v1027 = vshrl.u32 2131351028, %v1021
          %v1028 = vor.u32 %v1026, %v1027
          %v1029 = vshll.u32 2131351028, %v1020
          %v1030 = vshrl.u32 2102212464, %v1021
          %v1031 = vor.u32 %v1029, %v1030
          %v1032 = vshll.u32 2102212464, %v1020
          %v1033 = vshrl.u32 920167782, %v1021
          %v1034 = vor.u32 %v1032, %v1033
          %v1035 = vshll.u32 920167782, %v1020
          %v1036 = vshrl.u32 1326507024, %v1021
          %v1037 = vor.u32 %v1035, %v1036
          %vm1038 = vcmp.lt.s32.totalorder %v1019, 1
          %vm1039 = vcmp.lt.s32.totalorder %v1019, 2
          %vm1040 = vcmp.lt.s32.totalorder %v1019, 3
          %vm1041 = vcmp.lt.s32.totalorder %v1019, 4
          %v1042 = vsel %vm1038, %v1022, %v1025
          %v1043 = vsel %vm1041, %v1031, 2102212464
          %v1044 = vsel %vm1040, %v1028, %v1043
          %v1045 = vsel %vm1039, %v1042, %v1044
          %v1046 = vsel %vm1038, %v1025, %v1028
          %v1047 = vsel %vm1041, %v1034, 920167782
          %v1048 = vsel %vm1040, %v1031, %v1047
          %v1049 = vsel %vm1039, %v1046, %v1048
          %v1050 = vsel %vm1038, %v1028, %v1031
          %v1051 = vsel %vm1041, %v1037, 1326507024
          %v1052 = vsel %vm1040, %v1034, %v1051
          %v1053 = vsel %vm1039, %v1050, %v1052
          %v1054 = vshll.u32 %v1014, 8
          %v1055 = vand.u32 %v1054, 65535
          %v1056 = vshrl.u32 %v1054, 16
          %v1057 = vand.u32 %v1053, 65535
          %v1058 = vshrl.u32 %v1053, 16
          %v1059 = vmul.u32 %v1055, %v1057
          %v1060 = vmul.u32 %v1055, %v1058
          %v1061 = vmul.u32 %v1056, %v1057
          %v1062 = vmul.u32 %v1056, %v1058
          %v1063 = vshll.u32 %v1060, 16
          %v1064 = vshrl.u32 %v1060, 16
          %v1065 = vshll.u32 %v1061, 16
          %v1066 = vshrl.u32 %v1061, 16
          %vm1067 = vc.u32 %v1059, %v1063
          %v1068 = vsel %vm1067, 1, 0
          %v1069 = vadd.s32 %v1059, %v1063
          %v1070 = vadd.s32 %v1062, %v1068
          %vm1071 = vc.u32 %v1069, %v1065
          %v1072 = vsel %vm1071, 1, 0
          %v1073 = vadd.s32 %v1069, %v1065
          %v1074 = vadd.s32 %v1070, %v1072
          %v1075 = vadd.s32 %v1074, %v1064
          %v1076 = vadd.s32 %v1075, %v1066
          %v1077 = vand.u32 %v1054, 65535
          %v1078 = vshrl.u32 %v1054, 16
          %v1079 = vand.u32 %v1049, 65535
          %v1080 = vshrl.u32 %v1049, 16
          %v1081 = vmul.u32 %v1077, %v1079
          %v1082 = vmul.u32 %v1077, %v1080
          %v1083 = vmul.u32 %v1078, %v1079
          %v1084 = vmul.u32 %v1078, %v1080
          %v1085 = vshll.u32 %v1082, 16
          %v1086 = vshrl.u32 %v1082, 16
          %v1087 = vshll.u32 %v1083, 16
          %v1088 = vshrl.u32 %v1083, 16
          %vm1089 = vc.u32 %v1081, %v1085
          %v1090 = vsel %vm1089, 1, 0
          %v1091 = vadd.s32 %v1081, %v1085
          %v1092 = vadd.s32 %v1084, %v1090
          %vm1093 = vc.u32 %v1091, %v1087
          %v1094 = vsel %vm1093, 1, 0
          %v1095 = vadd.s32 %v1091, %v1087
          %v1096 = vadd.s32 %v1092, %v1094
          %v1097 = vadd.s32 %v1096, %v1086
          %v1098 = vadd.s32 %v1097, %v1088
          %v1099 = vmul.u32 %v1054, %v1045
          %v1100 = vadd.s32 %v1076, %v1095
          %vm1101 = vc.u32 %v1076, %v1095
          %v1102 = vadd.s32 %v1098, 1
          %v1103 = vsel %vm1101, %v1102, %v1098
          %v1104 = vadd.s32 %v1099, %v1103
          %v1105 = vadd.s32 %v1104, 536870912
          %v1106 = vshrl.u32 %v1105, 30
          %v1107 = vshll.u32 %v1106, 30
          %v1108 = vsub.s32 %v1104, %v1107
          %vm1109 = vcmp.lt.s32.totalorder %v1108, 0
          %v1110 = vsub.s32 0, %v1108
          %v1111 = vsel %vm1109, %v1110, %v1108
          %v1112 = vclz %v1111
          %v1113 = vsub.s32 %v1112, 2
          %vm1114 = vcmp.gt.s32.totalorder 0, %v1113
          %v1115 = vsel %vm1114, 0, %v1113
          %v1116 = vsub.s32 32, %v1115
          %v1117 = vshll.u32 %v1108, %v1115
          %v1118 = vshrl.u32 %v1100, %v1116
          %v1119 = vor.u32 %v1117, %v1118
          %v1120 = vsub.s32 4294967266, %v1115
          %v1121 = vadd.s32 %v1120, 127
          %v1122 = vshll.u32 %v1121, 23
          %v1123 = vor.u32 4788187, %v1122
          %v1124 = vand.u32 2147483647, %v1123
          %v1126 = vcvt.s32.f32 %v1119
          %v1127 = vmul.f32 %v1126, %v1124
          %v1128 = vxor.u32 %v1127, 2147483648
          %v1129 = vsel %vm1008, %v1128, %v1127
          %v1130 = vsub.s32 4, %v1106
          %v1131 = vsel %vm1008, %v1130, %v1106
          %v1132 = vsel %vm1007, %v851, %v1129
          %v1133 = vsel %vm1007, 0, %v1131
          %v1134 = vmul.f32 %v1132, %v1132
          %v1135 = vmul.f32 %v1134, -0.001358992
          %v1136 = vadd.f32 %v1135, 0.041655596
          %v1137 = vmul.f32 %v1134, %v1136
          %v1138 = vadd.f32 %v1137, -0.4999988
          %v1139 = vmul.f32 %v1134, %v1138
          %v1140 = vadd.f32 1.0, %v1139
          %v1141 = vmul.f32 %v1132, %v1132
          %v1142 = vmul.f32 %v1141, -0.00019511016
          %v1143 = vadd.f32 %v1142, 0.008332121
          %v1144 = vmul.f32 %v1141, %v1143
          %v1145 = vadd.f32 %v1144, -0.16666654
          %v1146 = vmul.f32 %v1141, %v1145
          %v1147 = vadd.f32 %v1146, 1.0
          %v1148 = vmul.f32 %v1147, %v1132
          %vm1149 = vweird.f32 %v851
          %v1150 = vadd.s32 %v1133, 3
          %v1151 = vand.u32 %v1150, 3
          %vm1152 = vcmp.lt.s32.totalorder %v1151, 2
          %vm1153 = vcmp.eq.s32.totalorder %v1151, 0
          %v1154 = vxor.u32 %v1148, 2147483648
          %v1155 = vsel %vm1153, %v1140, %v1154
          %vm1156 = vcmp.eq.s32.totalorder %v1151, 2
          %v1157 = vxor.u32 %v1140, 2147483648
          %v1158 = vsel %vm1156, %v1157, %v1148
          %v1159 = vsel %vm1152, %v1155, %v1158
          %v1160 = vsel %vm1149, nan, %v1159
          %1162 = vrot.lane.b32.xlu0 %v1160, 64
          %v1163 = vpop.permute.xlu0 %1162
          %vm1165 = vcmask 523264
          %v1166 = vsel %vm1165, %v1005, %v1163
          %v1167 = vpack.c.bf16 %v1166, %v1166
          %1168 = vst [vmem:[#allocation3] sm:$0xf] %v1167
        $region112: #{transformer_forward.1} parent=87 // pred_fallthru
          _
        %v1169 = vld [vmem:[#allocation2] sm:$0xff]
        %v1170 = vld [vmem:[%s806] sm:$0xff]
        %v1171 = vmul.f32 %v1169, %v833
        %1172 = vadd.xlane.f32.xlu0 %v1171
        %v1173 = vpop.xlane.xlu0 %1172
        %v1174 = vmul.f32 %v1173, 0.010416667
        %v1175 = vsub.f32 %v1169, %v1174
        %v1176 = vmul.f32 %v1175, %v833
        %v1177 = vmul.f32 %v1176, %v1176
        %1178 = vadd.xlane.f32.xlu0 %v1177
        %v1179 = vpop.xlane.xlu0 %1178
        %v1180 = vmul.f32 %v1179, 0.010416667
        %v1181 = vadd.f32 %v1180, 1e-05
        %v1182 = vrsqrt.pop %v1181
        %v1183 = vmul.f32 %v1182, %v1181
        %v1184 = vmul.f32 %v1183, %v1182
        %v1185 = vmul.f32 0.5, %v1184
        %v1186 = vsub.f32 1.5, %v1185
        %v1187 = vmul.f32 %v1182, %v1186
        %vm1188 = vweird.f32 %v1181
        %vm1189 = vweird.f32 %v1182
        %vm1190 = vmor %vm1188, %vm1189
        %v1191 = vsel %vm1190, %v1182, %v1187
        %v1192 = vmul.f32 %v1176, %v1191
        %v1193 = vperm.slane %v1170, 0
        %v1194 = vmul.f32 %v1192, %v1193
        %v1195 = vperm.slane %v1170, 1
        %v1196 = vadd.f32 %v1194, %v1195
        %v1197 = vpack.c.bf16 %v1196, %v1196
        %v1198 = vld [vmem:[%s671] sm:$0xff]
        %v1199 = vld [vmem:[%s671 + $0x8] sm:$0xf]
        %v1200 = vld [vmem:[%s671 + $0xc] sm:$0xff]
        %v1201 = vld [vmem:[%s671 + $0x14] sm:$0xf]
        %v1202 = vld [vmem:[%s671 + $0x18] sm:$0xff]
        %v1203 = vld [vmem:[%s671 + $0x20] sm:$0xf]
        %v1204 = vld [vmem:[%s671 + $0x24] sm:$0xff]
        %v1205 = vld [vmem:[%s671 + $0x2c] sm:$0xf]
        %v1206 = vld [vmem:[%s671 + $0x30] sm:$0xff]
        %v1207 = vld [vmem:[%s671 + $0x38] sm:$0xf]
        %v1208 = vld [vmem:[%s671 + $0x3c] sm:$0xff]
        %v1209 = vld [vmem:[%s671 + $0x44] sm:$0xf]
        %v1210 = vld [vmem:[%s671 + $0x48] sm:$0xff]
        %v1211 = vld [vmem:[%s671 + $0x50] sm:$0xf]
        %v1212 = vld [vmem:[%s671 + $0x54] sm:$0xff]
        %v1213 = vld [vmem:[%s671 + $0x5c] sm:$0xf]
        %v1214 = vld [vmem:[%s671 + $0x60] sm:$0xff]
        %v1215 = vld [vmem:[%s671 + $0x68] sm:$0xf]
        %v1216 = vld [vmem:[%s671 + $0x6c] sm:$0xff]
        %v1217 = vld [vmem:[%s671 + $0x74] sm:$0xf]
        %v1218 = vld [vmem:[%s671 + $0x78] sm:$0xff]
        %v1219 = vld [vmem:[%s671 + $0x80] sm:$0xf]
        %v1220 = vld [vmem:[%s671 + $0x84] sm:$0xff]
        %v1221 = vld [vmem:[%s671 + $0x8c] sm:$0xf]
        %v1222 = vld [vmem:[%s671 + $0x90] sm:$0xff]
        %v1223 = vld [vmem:[%s671 + $0x98] sm:$0xf]
        %v1224 = vld [vmem:[%s671 + $0x9c] sm:$0xff]
        %v1225 = vld [vmem:[%s671 + $0xa4] sm:$0xf]
        %v1226 = vld [vmem:[%s671 + $0xa8] sm:$0xff]
        %v1227 = vld [vmem:[%s671 + $0xb0] sm:$0xf]
        %v1228 = vld [vmem:[%s671 + $0xb4] sm:$0xff]
        %v1229 = vld [vmem:[%s671 + $0xbc] sm:$0xf]
        %v1230 = vld [vmem:[%s810] sm:$0x7]
        %v1232 = vperm.slane %v1230, 0
        %v1233 = vperm.slane %v1230, 1
        %v1234 = vperm.slane %v1230, 2
        %v1270 = vunpack.c.l.b16 %v1198
        %v1271 = vunpack.c.h.b16 %v1198
        %v1272 = vunpack.c.l.b16 %v1199
        %v1273 = vunpack.c.l.b16 %v1200
        %v1274 = vunpack.c.h.b16 %v1200
        %v1275 = vunpack.c.l.b16 %v1201
        %v1276 = vunpack.c.l.b16 %v1202
        %v1277 = vunpack.c.h.b16 %v1202
        %v1278 = vunpack.c.l.b16 %v1203
        %v1279 = vunpack.c.l.b16 %v1204
        %v1280 = vunpack.c.h.b16 %v1204
        %v1281 = vunpack.c.l.b16 %v1205
        %v1282 = vunpack.c.l.b16 %v1206
        %v1283 = vunpack.c.h.b16 %v1206
        %v1284 = vunpack.c.l.b16 %v1207
        %v1285 = vunpack.c.l.b16 %v1208
        %v1286 = vunpack.c.h.b16 %v1208
        %v1287 = vunpack.c.l.b16 %v1209
        %v1288 = vunpack.c.l.b16 %v1210
        %v1289 = vunpack.c.h.b16 %v1210
        %v1290 = vunpack.c.l.b16 %v1211
        %v1291 = vunpack.c.l.b16 %v1212
        %v1292 = vunpack.c.h.b16 %v1212
        %v1293 = vunpack.c.l.b16 %v1213
        %v1294 = vunpack.c.l.b16 %v1214
        %v1295 = vunpack.c.h.b16 %v1214
        %v1296 = vunpack.c.l.b16 %v1215
        %v1297 = vunpack.c.l.b16 %v1216
        %v1298 = vunpack.c.h.b16 %v1216
        %v1299 = vunpack.c.l.b16 %v1217
        %v1300 = vunpack.c.l.b16 %v1218
        %v1301 = vunpack.c.h.b16 %v1218
        %v1302 = vunpack.c.l.b16 %v1219
        %v1303 = vunpack.c.l.b16 %v1220
        %v1304 = vunpack.c.h.b16 %v1220
        %v1305 = vunpack.c.l.b16 %v1221
        %v1306 = vunpack.c.l.b16 %v1222
        %v1307 = vunpack.c.h.b16 %v1222
        %v1308 = vunpack.c.l.b16 %v1223
        %v1309 = vunpack.c.l.b16 %v1224
        %v1310 = vunpack.c.h.b16 %v1224
        %v1311 = vunpack.c.l.b16 %v1225
        %v1312 = vunpack.c.l.b16 %v1226
        %v1313 = vunpack.c.h.b16 %v1226
        %v1314 = vunpack.c.l.b16 %v1227
        %v1315 = vunpack.c.l.b16 %v1228
        %v1316 = vunpack.c.h.b16 %v1228
        %v1317 = vunpack.c.l.b16 %v1229
        %v1318 = vpack.c.b16 %v1273, %v1270
        %v1319 = vpack.c.b16 %v1274, %v1271
        %v1320 = vpack.c.b16 %v1275, %v1272
        %v1321 = vpack.c.b16 %v1279, %v1276
        %v1322 = vpack.c.b16 %v1280, %v1277
        %v1323 = vpack.c.b16 %v1281, %v1278
        %v1324 = vpack.c.b16 %v1285, %v1282
        %v1325 = vpack.c.b16 %v1286, %v1283
        %v1326 = vpack.c.b16 %v1287, %v1284
        %v1327 = vpack.c.b16 %v1291, %v1288
        %v1328 = vpack.c.b16 %v1292, %v1289
        %v1329 = vpack.c.b16 %v1293, %v1290
        %v1330 = vpack.c.b16 %v1297, %v1294
        %v1331 = vpack.c.b16 %v1298, %v1295
        %v1332 = vpack.c.b16 %v1299, %v1296
        %v1333 = vpack.c.b16 %v1303, %v1300
        %v1334 = vpack.c.b16 %v1304, %v1301
        %v1335 = vpack.c.b16 %v1305, %v1302
        %v1336 = vpack.c.b16 %v1309, %v1306
        %v1337 = vpack.c.b16 %v1310, %v1307
        %v1338 = vpack.c.b16 %v1311, %v1308
        %v1339 = vpack.c.b16 %v1315, %v1312
        %v1340 = vpack.c.b16 %v1316, %v1313
        %v1341 = vpack.c.b16 %v1317, %v1314
        %1366 = vmatpush.bf16.msra.mxu0 %v1339
        %1367 = vmatpush.bf16.msra.mxu0 %v1336
        %1368 = vmatpush.bf16.msra.mxu0 %v1333
        %1369 = vmatpush.bf16.msra.mxu0 %v1330
        %1370 = vmatpush.bf16.msra.mxu0 %v1327
        %1371 = vmatpush.bf16.msra.mxu0 %v1324
        %1372 = vmatpush.bf16.msra.mxu0 %v1321
        %1373 = vmatpush.bf16.msra.mxu0 %v1318
        %1374 = vmatmul.bf16.gmra.mxu0 %v1197
        %v1375 = vpop.f32.mrf.mxu0
        %v1376 = vadd.f32 %v1232, %v1375
        %v1377 = vpop.f32.mrf.mxu0
        %1378 = vdwg.mxu0
        %1379 = vmatpush.bf16.msra.mxu0 %v1340
        %1380 = vmatpush.bf16.msra.mxu0 %v1337
        %1381 = vmatpush.bf16.msra.mxu0 %v1334
        %1382 = vmatpush.bf16.msra.mxu0 %v1331
        %1383 = vmatpush.bf16.msra.mxu0 %v1328
        %1384 = vmatpush.bf16.msra.mxu0 %v1325
        %1385 = vmatpush.bf16.msra.mxu0 %v1322
        %1386 = vmatpush.bf16.msra.mxu0 %v1319
        %1387 = vmatmul.bf16.gmra.mxu0 %v1197
        %v1388 = vpop.f32.mrf.mxu0
        %v1389 = vadd.f32 %v1233, %v1388
        %v1390 = vpop.f32.mrf.mxu0
        %1391 = vdwg.mxu0
        %1392 = vmatpush.bf16.msra.mxu0 %v1341
        %1393 = vmatpush.bf16.msra.mxu0 %v1338
        %1394 = vmatpush.bf16.msra.mxu0 %v1335
        %1395 = vmatpush.bf16.msra.mxu0 %v1332
        %1396 = vmatpush.bf16.msra.mxu0 %v1329
        %1397 = vmatpush.bf16.msra.mxu0 %v1326
        %1398 = vmatpush.bf16.msra.mxu0 %v1323
        %1399 = vmatpush.bf16.msra.mxu0 %v1320
        %1400 = vmatmul.bf16.gmra.mxu0 %v1197
        %v1401 = vpop.f32.mrf.mxu0
        %v1402 = vadd.f32 %v1234, %v1401
        %v1403 = vpop.f32.mrf.mxu0
        %1404 = vdwg.mxu0
        %v1405 = vld [vmem:[%s814] sm:$0x3]
        %v1406 = vlaneseq
        %v1407 = vshrl.u32 %v1406, 7
        %vm1408 = vcmp.eq.s32.totalorder %v1407, 2
        %v1409 = vsel %vm1408, 1, 0
        %vm1410 = vcmp.eq.s32.totalorder %v1409, 1
        %v1411 = vperm.slane %v1405, 0
        %v1412 = vsel %vm1410, %v1411, %v1389
        %v1413 = vpack.c.bf16 %v1412, %v1412
        %v1414 = vperm.slane %v1405, 1
        %v1415 = vsel %vm1410, %v1414, %v1402
        %v1416 = vpack.c.bf16 %v1415, %v1415
        %vm1417 = vcmp.le.s32.totalorder %v830, 2
        %vm1418 = vcmp.ge.s32.totalorder %v830, 0
        %vm1419 = vcmp.lt.s32.totalorder %v830, 24
        %vm1420 = vmand %vm1418, %vm1419
        %v1421 = vsel %vm1420, 1, 0
        %v1422 = vcvt.s32.f32 %v1421
        %v1423 = vmul.f32 %v1376, %v1422
        %v1424 = vpack.c.bf16 %v1423, %v1423
        %1425 = vmatpush.bf16.xpose.msra.mxu0 0
        %1426 = vmatpush.bf16.xpose.msra.mxu0 0
        %1427 = vmatpush.bf16.xpose.msra.mxu0 0
        %1428 = vmatpush.bf16.xpose.msra.mxu0 0
        %1429 = vmatpush.bf16.xpose.msra.mxu0 0
        %1430 = vmatpush.bf16.xpose.msra.mxu0 0
        %1431 = vmatpush.bf16.xpose.msra.mxu0 0
        %1432 = vmatpush.bf16.xpose.msra.mxu0 %v1413
        %1433 = vmatmul.bf16.gmra.mxu0 %v1424
        %v1434 = vpop.f32.mrf.mxu0
        %v1435 = vadd.f32 0.0, %v1434
        %v1436 = vpop.f32.mrf.mxu0
        %1437 = vdwg.mxu0
        %v1438 = vmul.f32 %v1435, 0.20412415
        %v1439 = vsel %vm1417, %v1438, -1e+30
        %vm1440 = vcmask 64512
        %v1441 = vsel %vm1440, %v1439, -inf
        %1442 = vmax.xlane.f32.xlu0 %v1441
        %v1443 = vpop.xlane.xlu0 %1442
        %v1444 = vsub.f32 %v1439, %v1443
        %v1445 = vmul.f32 %v1444, 1.442695
        %v1446 = vpow.pop %v1445
        %v1447 = vsel %vm1440, %v1446, 0.0
        %1448 = vadd.xlane.f32.xlu0 %v1447
        %v1449 = vpop.xlane.xlu0 %1448
        %v1450 = vrcp.pop %v1449
        %v1451 = vmul.f32 %v1446, %v1450
        %v1452 = vpack.c.bf16 %v1422, %v1422
        %v1453 = vunpack.c.l.bf16 %v1416
        %v1454 = vunpack.c.l.bf16 %v1452
        %v1455 = vmul.f32 %v1453, %v1454
        %v1456 = vpack.c.bf16 %v1455, %v1455
        %v1457 = vpack.c.bf16 %v1451, %v1451
        %vm1458 = vcmp.ge.s32.totalorder %v830, 24
        %vm1459 = vcmp.lt.s32.totalorder %v830, 48
        %vm1460 = vmand %vm1458, %vm1459
        %v1461 = vsel %vm1460, 1, 0
        %v1462 = vcvt.s32.f32 %v1461
        %v1463 = vmul.f32 %v1376, %v1462
        %v1464 = vpack.c.bf16 %v1463, %v1463
        %1465 = vmatpush.bf16.xpose.msra.mxu0 0
        %1466 = vmatpush.bf16.xpose.msra.mxu0 0
        %1467 = vmatpush.bf16.xpose.msra.mxu0 0
        %1468 = vmatpush.bf16.xpose.msra.mxu0 0
        %1469 = vmatpush.bf16.xpose.msra.mxu0 0
        %1470 = vmatpush.bf16.xpose.msra.mxu0 0
        %1471 = vmatpush.bf16.xpose.msra.mxu0 0
        %1472 = vmatpush.bf16.xpose.msra.mxu0 %v1413
        %1473 = vmatmul.bf16.gmra.mxu0 %v1464
        %v1474 = vpop.f32.mrf.mxu0
        %v1475 = vadd.f32 0.0, %v1474
        %v1476 = vpop.f32.mrf.mxu0
        %1477 = vdwg.mxu0
        %v1478 = vmul.f32 %v1475, 0.20412415
        %v1479 = vsel %vm1417, %v1478, -1e+30
        %v1480 = vsel %vm1440, %v1479, -inf
        %1481 = vmax.xlane.f32.xlu0 %v1480
        %v1482 = vpop.xlane.xlu0 %1481
        %v1483 = vsub.f32 %v1479, %v1482
        %v1484 = vmul.f32 %v1483, 1.442695
        %v1485 = vpow.pop %v1484
        %v1486 = vsel %vm1440, %v1485, 0.0
        %1487 = vadd.xlane.f32.xlu0 %v1486
        %v1488 = vpop.xlane.xlu0 %1487
        %v1489 = vrcp.pop %v1488
        %v1490 = vmul.f32 %v1485, %v1489
        %v1491 = vpack.c.bf16 %v1462, %v1462
        %v1492 = vunpack.c.l.bf16 %v1491
        %v1493 = vmul.f32 %v1453, %v1492
        %v1494 = vpack.c.bf16 %v1493, %v1493
        %v1495 = vpack.c.bf16 %v1490, %v1490
        %v1497 = vsel %vm1440, %v1495, 0
        %vm1499 = vcmask 1043456
        %v1501 = vsel %vm1499, %v1494, 0
        %1503 = vmatpush.bf16.msra.mxu0 0
        %1504 = vmatpush.bf16.msra.mxu0 0
        %1505 = vmatpush.bf16.msra.mxu0 0
        %1506 = vmatpush.bf16.msra.mxu0 0
        %1507 = vmatpush.bf16.msra.mxu0 0
        %1508 = vmatpush.bf16.msra.mxu0 0
        %1509 = vmatpush.bf16.msra.mxu0 0
        %1510 = vmatpush.bf16.msra.mxu0 %v1501
        %1511 = vmatmul.bf16.gmra.mxu0 %v1497
        %v1512 = vpop.f32.mrf.mxu0
        %v1513 = vadd.f32 0.0, %v1512
        %v1514 = vpop.f32.mrf.mxu0
        %1515 = vdwg.mxu0
        %v1517 = vsel %vm1440, %v1457, 0
        %v1520 = vsel %vm1499, %v1456, 0
        %1522 = vmatpush.bf16.msra.mxu0 0
        %1523 = vmatpush.bf16.msra.mxu0 0
        %1524 = vmatpush.bf16.msra.mxu0 0
        %1525 = vmatpush.bf16.msra.mxu0 0
        %1526 = vmatpush.bf16.msra.mxu0 0
        %1527 = vmatpush.bf16.msra.mxu0 0
        %1528 = vmatpush.bf16.msra.mxu0 0
        %1529 = vmatpush.bf16.msra.mxu0 %v1520
        %1530 = vmatmul.bf16.gmra.mxu0 %v1517
        %v1531 = vpop.f32.mrf.mxu0
        %v1532 = vadd.f32 %v1513, %v1531
        %v1533 = vpop.f32.mrf.mxu0
        %1534 = vdwg.mxu0
        %vm1535 = vcmp.ge.s32.totalorder %v830, 48
        %vm1536 = vcmp.lt.s32.totalorder %v830, 72
        %vm1537 = vmand %vm1535, %vm1536
        %v1538 = vsel %vm1537, 1, 0
        %v1539 = vcvt.s32.f32 %v1538
        %v1540 = vmul.f32 %v1376, %v1539
        %v1541 = vpack.c.bf16 %v1540, %v1540
        %1542 = vmatpush.bf16.xpose.msra.mxu0 0
        %1543 = vmatpush.bf16.xpose.msra.mxu0 0
        %1544 = vmatpush.bf16.xpose.msra.mxu0 0
        %1545 = vmatpush.bf16.xpose.msra.mxu0 0
        %1546 = vmatpush.bf16.xpose.msra.mxu0 0
        %1547 = vmatpush.bf16.xpose.msra.mxu0 0
        %1548 = vmatpush.bf16.xpose.msra.mxu0 0
        %1549 = vmatpush.bf16.xpose.msra.mxu0 %v1413
        %1550 = vmatmul.bf16.gmra.mxu0 %v1541
        %v1551 = vpop.f32.mrf.mxu0
        %v1552 = vadd.f32 0.0, %v1551
        %v1553 = vpop.f32.mrf.mxu0
        %1554 = vdwg.mxu0
        %v1555 = vmul.f32 %v1552, 0.20412415
        %v1556 = vsel %vm1417, %v1555, -1e+30
        %v1557 = vsel %vm1440, %v1556, -inf
        %1558 = vmax.xlane.f32.xlu0 %v1557
        %v1559 = vpop.xlane.xlu0 %1558
        %v1560 = vsub.f32 %v1556, %v1559
        %v1561 = vmul.f32 %v1560, 1.442695
        %v1562 = vpow.pop %v1561
        %v1563 = vsel %vm1440, %v1562, 0.0
        %1564 = vadd.xlane.f32.xlu0 %v1563
        %v1565 = vpop.xlane.xlu0 %1564
        %v1566 = vrcp.pop %v1565
        %v1567 = vmul.f32 %v1562, %v1566
        %v1568 = vpack.c.bf16 %v1539, %v1539
        %v1569 = vunpack.c.l.bf16 %v1568
        %v1570 = vmul.f32 %v1453, %v1569
        %v1571 = vpack.c.bf16 %v1570, %v1570
        %v1572 = vpack.c.bf16 %v1567, %v1567
        %v1574 = vsel %vm1440, %v1572, 0
        %v1577 = vsel %vm1499, %v1571, 0
        %1579 = vmatpush.bf16.msra.mxu0 0
        %1580 = vmatpush.bf16.msra.mxu0 0
        %1581 = vmatpush.bf16.msra.mxu0 0
        %1582 = vmatpush.bf16.msra.mxu0 0
        %1583 = vmatpush.bf16.msra.mxu0 0
        %1584 = vmatpush.bf16.msra.mxu0 0
        %1585 = vmatpush.bf16.msra.mxu0 0
        %1586 = vmatpush.bf16.msra.mxu0 %v1577
        %1587 = vmatmul.bf16.gmra.mxu0 %v1574
        %v1588 = vpop.f32.mrf.mxu0
        %v1589 = vadd.f32 0.0, %v1588
        %v1590 = vpop.f32.mrf.mxu0
        %1591 = vdwg.mxu0
        %v1592 = vadd.f32 %v1532, %v1589
        %vm1593 = vcmp.ge.s32.totalorder %v830, 72
        %vm1594 = vmand %vm1593, %vm831
        %v1595 = vsel %vm1594, 1, 0
        %v1596 = vcvt.s32.f32 %v1595
        %v1597 = vmul.f32 %v1376, %v1596
        %v1598 = vpack.c.bf16 %v1597, %v1597
        %1599 = vmatpush.bf16.xpose.msra.mxu0 0
        %1600 = vmatpush.bf16.xpose.msra.mxu0 0
        %1601 = vmatpush.bf16.xpose.msra.mxu0 0
        %1602 = vmatpush.bf16.xpose.msra.mxu0 0
        %1603 = vmatpush.bf16.xpose.msra.mxu0 0
        %1604 = vmatpush.bf16.xpose.msra.mxu0 0
        %1605 = vmatpush.bf16.xpose.msra.mxu0 0
        %1606 = vmatpush.bf16.xpose.msra.mxu0 %v1413
        %1607 = vmatmul.bf16.gmra.mxu0 %v1598
        %v1608 = vpop.f32.mrf.mxu0
        %v1609 = vadd.f32 0.0, %v1608
        %v1610 = vpop.f32.mrf.mxu0
        %1611 = vdwg.mxu0
        %v1612 = vmul.f32 %v1609, 0.20412415
        %v1613 = vsel %vm1417, %v1612, -1e+30
        %v1614 = vsel %vm1440, %v1613, -inf
        %1615 = vmax.xlane.f32.xlu0 %v1614
        %v1616 = vpop.xlane.xlu0 %1615
        %v1617 = vsub.f32 %v1613, %v1616
        %v1618 = vmul.f32 %v1617, 1.442695
        %v1619 = vpow.pop %v1618
        %v1620 = vsel %vm1440, %v1619, 0.0
        %1621 = vadd.xlane.f32.xlu0 %v1620
        %v1622 = vpop.xlane.xlu0 %1621
        %v1623 = vrcp.pop %v1622
        %v1624 = vmul.f32 %v1619, %v1623
        %v1625 = vpack.c.bf16 %v1596, %v1596
        %v1626 = vunpack.c.l.bf16 %v1625
        %v1627 = vmul.f32 %v1453, %v1626
        %v1628 = vpack.c.bf16 %v1627, %v1627
        %v1629 = vpack.c.bf16 %v1624, %v1624
        %v1631 = vsel %vm1440, %v1629, 0
        %v1634 = vsel %vm1499, %v1628, 0
        %1636 = vmatpush.bf16.msra.mxu0 0
        %1637 = vmatpush.bf16.msra.mxu0 0
        %1638 = vmatpush.bf16.msra.mxu0 0
        %1639 = vmatpush.bf16.msra.mxu0 0
        %1640 = vmatpush.bf16.msra.mxu0 0
        %1641 = vmatpush.bf16.msra.mxu0 0
        %1642 = vmatpush.bf16.msra.mxu0 0
        %1643 = vmatpush.bf16.msra.mxu0 %v1634
        %1644 = vmatmul.bf16.gmra.mxu0 %v1631
        %v1645 = vpop.f32.mrf.mxu0
        %v1646 = vadd.f32 0.0, %v1645
        %v1647 = vpop.f32.mrf.mxu0
        %1648 = vdwg.mxu0
        %v1649 = vadd.f32 %v1592, %v1646
        %v1650 = vpack.c.bf16 %v1649, %v1649
        %v1651 = vld [vmem:[%s681] sm:$0xf]
        %v1652 = vld [vmem:[%s681 + $0x4] sm:$0xf]
        %v1653 = vld [vmem:[%s681 + $0x8] sm:$0xf]
        %v1654 = vld [vmem:[%s681 + $0xc] sm:$0xf]
        %v1655 = vld [vmem:[%s681 + $0x10] sm:$0xf]
        %v1656 = vld [vmem:[%s681 + $0x14] sm:$0xf]
        %v1657 = vld [vmem:[%s681 + $0x18] sm:$0xf]
        %v1658 = vld [vmem:[%s681 + $0x1c] sm:$0xf]
        %v1659 = vld [vmem:[%s681 + $0x20] sm:$0xf]
        %v1660 = vld [vmem:[%s681 + $0x24] sm:$0xf]
        %v1661 = vld [vmem:[%s681 + $0x28] sm:$0xf]
        %v1662 = vld [vmem:[%s681 + $0x2c] sm:$0xf]
        %v1663 = vld [vmem:[%s681 + $0x30] sm:$0xf]
        %v1664 = vld [vmem:[%s681 + $0x34] sm:$0xf]
        %v1665 = vld [vmem:[%s681 + $0x38] sm:$0xf]
        %v1666 = vld [vmem:[%s681 + $0x3c] sm:$0xf]
        %v1667 = vld [vmem:[%s817] sm:$0x1]
        %v1669 = vperm.slane %v1667, 0
        %v1687 = vunpack.c.l.b16 %v1651
        %v1688 = vunpack.c.l.b16 %v1652
        %v1689 = vunpack.c.l.b16 %v1653
        %v1690 = vunpack.c.l.b16 %v1654
        %v1691 = vunpack.c.l.b16 %v1655
        %v1692 = vunpack.c.l.b16 %v1656
        %v1693 = vunpack.c.l.b16 %v1657
        %v1694 = vunpack.c.l.b16 %v1658
        %v1695 = vunpack.c.l.b16 %v1659
        %v1696 = vunpack.c.l.b16 %v1660
        %v1697 = vunpack.c.l.b16 %v1661
        %v1698 = vunpack.c.l.b16 %v1662
        %v1699 = vunpack.c.l.b16 %v1663
        %v1700 = vunpack.c.l.b16 %v1664
        %v1701 = vunpack.c.l.b16 %v1665
        %v1702 = vunpack.c.l.b16 %v1666
        %v1703 = vpack.c.b16 %v1688, %v1687
        %v1704 = vpack.c.b16 %v1690, %v1689
        %v1705 = vpack.c.b16 %v1692, %v1691
        %v1706 = vpack.c.b16 %v1694, %v1693
        %v1707 = vpack.c.b16 %v1696, %v1695
        %v1708 = vpack.c.b16 %v1698, %v1697
        %v1709 = vpack.c.b16 %v1700, %v1699
        %v1710 = vpack.c.b16 %v1702, %v1701
        %1719 = vmatpush.bf16.msra.mxu0 %v1710
        %1720 = vmatpush.bf16.msra.mxu0 %v1709
        %1721 = vmatpush.bf16.msra.mxu0 %v1708
        %1722 = vmatpush.bf16.msra.mxu0 %v1707
        %1723 = vmatpush.bf16.msra.mxu0 %v1706
        %1724 = vmatpush.bf16.msra.mxu0 %v1705
        %1725 = vmatpush.bf16.msra.mxu0 %v1704
        %1726 = vmatpush.bf16.msra.mxu0 %v1703
        %1727 = vmatmul.bf16.gmra.mxu0 %v1650
        %v1728 = vpop.f32.mrf.mxu0
        %v1729 = vadd.f32 %v1669, %v1728
        %v1730 = vpop.f32.mrf.mxu0
        %1731 = vdwg.mxu0
        %v1732 = vadd.f32 %v1169, %v1729
        %v1733 = vmul.f32 %v1732, %v833
        %1734 = vadd.xlane.f32.xlu0 %v1733
        %v1735 = vpop.xlane.xlu0 %1734
        %v1736 = vmul.f32 %v1735, 0.010416667
        %v1737 = vsub.f32 %v1732, %v1736
        %v1738 = vmul.f32 %v1737, %v833
        %v1739 = vmul.f32 %v1738, %v1738
        %1740 = vadd.xlane.f32.xlu0 %v1739
        %v1741 = vpop.xlane.xlu0 %1740
        %v1742 = vmul.f32 %v1741, 0.010416667
        %v1743 = vadd.f32 %v1742, 1e-05
        %v1744 = vrsqrt.pop %v1743
        %v1745 = vmul.f32 %v1744, %v1743
        %v1746 = vmul.f32 %v1745, %v1744
        %v1747 = vmul.f32 0.5, %v1746
        %v1748 = vsub.f32 1.5, %v1747
        %v1749 = vmul.f32 %v1744, %v1748
        %vm1750 = vweird.f32 %v1743
        %vm1751 = vweird.f32 %v1744
        %vm1752 = vmor %vm1750, %vm1751
        %v1753 = vsel %vm1752, %v1744, %v1749
        %v1754 = vmul.f32 %v1738, %v1753
        %v1755 = vperm.slane %v1170, 2
        %v1756 = vmul.f32 %v1754, %v1755
        %v1757 = vperm.slane %v1170, 3
        %v1758 = vadd.f32 %v1756, %v1757
        %v1759 = vpack.c.bf16 %v1758, %v1758
        %v1760 = vld [vmem:[%s691] sm:$0xff]
        %v1761 = vld [vmem:[%s691 + $0x8] sm:$0xf]
        %v1762 = vld [vmem:[%s691 + $0xc] sm:$0xff]
        %v1763 = vld [vmem:[%s691 + $0x14] sm:$0xf]
        %v1764 = vld [vmem:[%s691 + $0x18] sm:$0xff]
        %v1765 = vld [vmem:[%s691 + $0x20] sm:$0xf]
        %v1766 = vld [vmem:[%s691 + $0x24] sm:$0xff]
        %v1767 = vld [vmem:[%s691 + $0x2c] sm:$0xf]
        %v1768 = vld [vmem:[%s691 + $0x30] sm:$0xff]
        %v1769 = vld [vmem:[%s691 + $0x38] sm:$0xf]
        %v1770 = vld [vmem:[%s691 + $0x3c] sm:$0xff]
        %v1771 = vld [vmem:[%s691 + $0x44] sm:$0xf]
        %v1772 = vld [vmem:[%s691 + $0x48] sm:$0xff]
        %v1773 = vld [vmem:[%s691 + $0x50] sm:$0xf]
        %v1774 = vld [vmem:[%s691 + $0x54] sm:$0xff]
        %v1775 = vld [vmem:[%s691 + $0x5c] sm:$0xf]
        %v1776 = vld [vmem:[%s691 + $0x60] sm:$0xff]
        %v1777 = vld [vmem:[%s691 + $0x68] sm:$0xf]
        %v1778 = vld [vmem:[%s691 + $0x6c] sm:$0xff]
        %v1779 = vld [vmem:[%s691 + $0x74] sm:$0xf]
        %v1780 = vld [vmem:[%s691 + $0x78] sm:$0xff]
        %v1781 = vld [vmem:[%s691 + $0x80] sm:$0xf]
        %v1782 = vld [vmem:[%s691 + $0x84] sm:$0xff]
        %v1783 = vld [vmem:[%s691 + $0x8c] sm:$0xf]
        %v1784 = vld [vmem:[%s691 + $0x90] sm:$0xff]
        %v1785 = vld [vmem:[%s691 + $0x98] sm:$0xf]
        %v1786 = vld [vmem:[%s691 + $0x9c] sm:$0xff]
        %v1787 = vld [vmem:[%s691 + $0xa4] sm:$0xf]
        %v1788 = vld [vmem:[%s691 + $0xa8] sm:$0xff]
        %v1789 = vld [vmem:[%s691 + $0xb0] sm:$0xf]
        %v1790 = vld [vmem:[%s691 + $0xb4] sm:$0xff]
        %v1791 = vld [vmem:[%s691 + $0xbc] sm:$0xf]
        %v1792 = vld [vmem:[%s821] sm:$0x7]
        %v1794 = vperm.slane %v1792, 0
        %v1795 = vperm.slane %v1792, 1
        %v1796 = vperm.slane %v1792, 2
        %v1832 = vunpack.c.l.b16 %v1760
        %v1833 = vunpack.c.h.b16 %v1760
        %v1834 = vunpack.c.l.b16 %v1761
        %v1835 = vunpack.c.l.b16 %v1762
        %v1836 = vunpack.c.h.b16 %v1762
        %v1837 = vunpack.c.l.b16 %v1763
        %v1838 = vunpack.c.l.b16 %v1764
        %v1839 = vunpack.c.h.b16 %v1764
        %v1840 = vunpack.c.l.b16 %v1765
        %v1841 = vunpack.c.l.b16 %v1766
        %v1842 = vunpack.c.h.b16 %v1766
        %v1843 = vunpack.c.l.b16 %v1767
        %v1844 = vunpack.c.l.b16 %v1768
        %v1845 = vunpack.c.h.b16 %v1768
        %v1846 = vunpack.c.l.b16 %v1769
        %v1847 = vunpack.c.l.b16 %v1770
        %v1848 = vunpack.c.h.b16 %v1770
        %v1849 = vunpack.c.l.b16 %v1771
        %v1850 = vunpack.c.l.b16 %v1772
        %v1851 = vunpack.c.h.b16 %v1772
        %v1852 = vunpack.c.l.b16 %v1773
        %v1853 = vunpack.c.l.b16 %v1774
        %v1854 = vunpack.c.h.b16 %v1774
        %v1855 = vunpack.c.l.b16 %v1775
        %v1856 = vunpack.c.l.b16 %v1776
        %v1857 = vunpack.c.h.b16 %v1776
        %v1858 = vunpack.c.l.b16 %v1777
        %v1859 = vunpack.c.l.b16 %v1778
        %v1860 = vunpack.c.h.b16 %v1778
        %v1861 = vunpack.c.l.b16 %v1779
        %v1862 = vunpack.c.l.b16 %v1780
        %v1863 = vunpack.c.h.b16 %v1780
        %v1864 = vunpack.c.l.b16 %v1781
        %v1865 = vunpack.c.l.b16 %v1782
        %v1866 = vunpack.c.h.b16 %v1782
        %v1867 = vunpack.c.l.b16 %v1783
        %v1868 = vunpack.c.l.b16 %v1784
        %v1869 = vunpack.c.h.b16 %v1784
        %v1870 = vunpack.c.l.b16 %v1785
        %v1871 = vunpack.c.l.b16 %v1786
        %v1872 = vunpack.c.h.b16 %v1786
        %v1873 = vunpack.c.l.b16 %v1787
        %v1874 = vunpack.c.l.b16 %v1788
        %v1875 = vunpack.c.h.b16 %v1788
        %v1876 = vunpack.c.l.b16 %v1789
        %v1877 = vunpack.c.l.b16 %v1790
        %v1878 = vunpack.c.h.b16 %v1790
        %v1879 = vunpack.c.l.b16 %v1791
        %v1880 = vpack.c.b16 %v1835, %v1832
        %v1881 = vpack.c.b16 %v1836, %v1833
        %v1882 = vpack.c.b16 %v1837, %v1834
        %v1883 = vpack.c.b16 %v1841, %v1838
        %v1884 = vpack.c.b16 %v1842, %v1839
        %v1885 = vpack.c.b16 %v1843, %v1840
        %v1886 = vpack.c.b16 %v1847, %v1844
        %v1887 = vpack.c.b16 %v1848, %v1845
        %v1888 = vpack.c.b16 %v1849, %v1846
        %v1889 = vpack.c.b16 %v1853, %v1850
        %v1890 = vpack.c.b16 %v1854, %v1851
        %v1891 = vpack.c.b16 %v1855, %v1852
        %v1892 = vpack.c.b16 %v1859, %v1856
        %v1893 = vpack.c.b16 %v1860, %v1857
        %v1894 = vpack.c.b16 %v1861, %v1858
        %v1895 = vpack.c.b16 %v1865, %v1862
        %v1896 = vpack.c.b16 %v1866, %v1863
        %v1897 = vpack.c.b16 %v1867, %v1864
        %v1898 = vpack.c.b16 %v1871, %v1868
        %v1899 = vpack.c.b16 %v1872, %v1869
        %v1900 = vpack.c.b16 %v1873, %v1870
        %v1901 = vpack.c.b16 %v1877, %v1874
        %v1902 = vpack.c.b16 %v1878, %v1875
        %v1903 = vpack.c.b16 %v1879, %v1876
        %1928 = vmatpush.bf16.msra.mxu0 %v1901
        %1929 = vmatpush.bf16.msra.mxu0 %v1898
        %1930 = vmatpush.bf16.msra.mxu0 %v1895
        %1931 = vmatpush.bf16.msra.mxu0 %v1892
        %1932 = vmatpush.bf16.msra.mxu0 %v1889
        %1933 = vmatpush.bf16.msra.mxu0 %v1886
        %1934 = vmatpush.bf16.msra.mxu0 %v1883
        %1935 = vmatpush.bf16.msra.mxu0 %v1880
        %1936 = vmatmul.bf16.gmra.mxu0 %v1759
        %v1937 = vpop.f32.mrf.mxu0
        %v1938 = vadd.f32 %v1794, %v1937
        %v1939 = vpop.f32.mrf.mxu0
        %1940 = vdwg.mxu0
        %1941 = vmatpush.bf16.msra.mxu0 %v1902
        %1942 = vmatpush.bf16.msra.mxu0 %v1899
        %1943 = vmatpush.bf16.msra.mxu0 %v1896
        %1944 = vmatpush.bf16.msra.mxu0 %v1893
        %1945 = vmatpush.bf16.msra.mxu0 %v1890
        %1946 = vmatpush.bf16.msra.mxu0 %v1887
        %1947 = vmatpush.bf16.msra.mxu0 %v1884
        %1948 = vmatpush.bf16.msra.mxu0 %v1881
        %1949 = vmatmul.bf16.gmra.mxu0 %v1759
        %v1950 = vpop.f32.mrf.mxu0
        %v1951 = vadd.f32 %v1795, %v1950
        %v1952 = vpop.f32.mrf.mxu0
        %1953 = vdwg.mxu0
        %1954 = vmatpush.bf16.msra.mxu0 %v1903
        %1955 = vmatpush.bf16.msra.mxu0 %v1900
        %1956 = vmatpush.bf16.msra.mxu0 %v1897
        %1957 = vmatpush.bf16.msra.mxu0 %v1894
        %1958 = vmatpush.bf16.msra.mxu0 %v1891
        %1959 = vmatpush.bf16.msra.mxu0 %v1888
        %1960 = vmatpush.bf16.msra.mxu0 %v1885
        %1961 = vmatpush.bf16.msra.mxu0 %v1882
        %1962 = vmatmul.bf16.gmra.mxu0 %v1759
        %v1963 = vpop.f32.mrf.mxu0
        %v1964 = vadd.f32 %v1796, %v1963
        %v1965 = vpop.f32.mrf.mxu0
        %1966 = vdwg.mxu0
        %v1967 = vmax.f32 %v1938, 0.0
        %v1968 = vmax.f32 %v1951, 0.0
        %v1969 = vmax.f32 %v1964, 0.0
        %v1970 = vpack.c.bf16 %v1967, %v1967
        %v1971 = vpack.c.bf16 %v1968, %v1968
        %v1972 = vpack.c.bf16 %v1969, %v1969
        %v1973 = vld [vmem:[%s701] sm:$0xf]
        %v1974 = vld [vmem:[%s701 + $0x4] sm:$0xf]
        %v1975 = vld [vmem:[%s701 + $0x8] sm:$0xf]
        %v1976 = vld [vmem:[%s701 + $0xc] sm:$0xf]
        %v1977 = vld [vmem:[%s701 + $0x10] sm:$0xf]
        %v1978 = vld [vmem:[%s701 + $0x14] sm:$0xf]
        %v1979 = vld [vmem:[%s701 + $0x18] sm:$0xf]
        %v1980 = vld [vmem:[%s701 + $0x1c] sm:$0xf]
        %v1981 = vld [vmem:[%s701 + $0x20] sm:$0xf]
        %v1982 = vld [vmem:[%s701 + $0x24] sm:$0xf]
        %v1983 = vld [vmem:[%s701 + $0x28] sm:$0xf]
        %v1984 = vld [vmem:[%s701 + $0x2c] sm:$0xf]
        %v1985 = vld [vmem:[%s701 + $0x30] sm:$0xf]
        %v1986 = vld [vmem:[%s701 + $0x34] sm:$0xf]
        %v1987 = vld [vmem:[%s701 + $0x38] sm:$0xf]
        %v1988 = vld [vmem:[%s701 + $0x3c] sm:$0xf]
        %v1989 = vld [vmem:[%s701 + $0x40] sm:$0xf]
        %v1990 = vld [vmem:[%s701 + $0x44] sm:$0xf]
        %v1991 = vld [vmem:[%s701 + $0x48] sm:$0xf]
        %v1992 = vld [vmem:[%s701 + $0x4c] sm:$0xf]
        %v1993 = vld [vmem:[%s701 + $0x50] sm:$0xf]
        %v1994 = vld [vmem:[%s701 + $0x54] sm:$0xf]
        %v1995 = vld [vmem:[%s701 + $0x58] sm:$0xf]
        %v1996 = vld [vmem:[%s701 + $0x5c] sm:$0xf]
        %v1997 = vld [vmem:[%s701 + $0x60] sm:$0xf]
        %v1998 = vld [vmem:[%s701 + $0x64] sm:$0xf]
        %v1999 = vld [vmem:[%s701 + $0x68] sm:$0xf]
        %v2000 = vld [vmem:[%s701 + $0x6c] sm:$0xf]
        %v2001 = vld [vmem:[%s701 + $0x70] sm:$0xf]
        %v2002 = vld [vmem:[%s701 + $0x74] sm:$0xf]
        %v2003 = vld [vmem:[%s701 + $0x78] sm:$0xf]
        %v2004 = vld [vmem:[%s701 + $0x7c] sm:$0xf]
        %v2005 = vld [vmem:[%s701 + $0x80] sm:$0xf]
        %v2006 = vld [vmem:[%s701 + $0x84] sm:$0xf]
        %v2007 = vld [vmem:[%s701 + $0x88] sm:$0xf]
        %v2008 = vld [vmem:[%s701 + $0x8c] sm:$0xf]
        %v2009 = vld [vmem:[%s701 + $0x90] sm:$0xf]
        %v2010 = vld [vmem:[%s701 + $0x94] sm:$0xf]
        %v2011 = vld [vmem:[%s701 + $0x98] sm:$0xf]
        %v2012 = vld [vmem:[%s701 + $0x9c] sm:$0xf]
        %v2013 = vld [vmem:[%s701 + $0xa0] sm:$0xf]
        %v2014 = vld [vmem:[%s701 + $0xa4] sm:$0xf]
        %v2015 = vld [vmem:[%s701 + $0xa8] sm:$0xf]
        %v2016 = vld [vmem:[%s701 + $0xac] sm:$0xf]
        %v2017 = vld [vmem:[%s701 + $0xb0] sm:$0xf]
        %v2018 = vld [vmem:[%s701 + $0xb4] sm:$0xf]
        %v2019 = vld [vmem:[%s701 + $0xb8] sm:$0xf]
        %v2020 = vld [vmem:[%s701 + $0xbc] sm:$0xf]
        %v2021 = vld [vmem:[%s824] sm:$0x1]
        %v2023 = vperm.slane %v2021, 0
        %v2073 = vunpack.c.l.b16 %v1973
        %v2074 = vunpack.c.l.b16 %v1974
        %v2075 = vunpack.c.l.b16 %v1975
        %v2076 = vunpack.c.l.b16 %v1976
        %v2077 = vunpack.c.l.b16 %v1977
        %v2078 = vunpack.c.l.b16 %v1978
        %v2079 = vunpack.c.l.b16 %v1979
        %v2080 = vunpack.c.l.b16 %v1980
        %v2081 = vunpack.c.l.b16 %v1981
        %v2082 = vunpack.c.l.b16 %v1982
        %v2083 = vunpack.c.l.b16 %v1983
        %v2084 = vunpack.c.l.b16 %v1984
        %v2085 = vunpack.c.l.b16 %v1985
        %v2086 = vunpack.c.l.b16 %v1986
        %v2087 = vunpack.c.l.b16 %v1987
        %v2088 = vunpack.c.l.b16 %v1988
        %v2089 = vunpack.c.l.b16 %v1989
        %v2090 = vunpack.c.l.b16 %v1990
        %v2091 = vunpack.c.l.b16 %v1991
        %v2092 = vunpack.c.l.b16 %v1992
        %v2093 = vunpack.c.l.b16 %v1993
        %v2094 = vunpack.c.l.b16 %v1994
        %v2095 = vunpack.c.l.b16 %v1995
        %v2096 = vunpack.c.l.b16 %v1996
        %v2097 = vunpack.c.l.b16 %v1997
        %v2098 = vunpack.c.l.b16 %v1998
        %v2099 = vunpack.c.l.b16 %v1999
        %v2100 = vunpack.c.l.b16 %v2000
        %v2101 = vunpack.c.l.b16 %v2001
        %v2102 = vunpack.c.l.b16 %v2002
        %v2103 = vunpack.c.l.b16 %v2003
        %v2104 = vunpack.c.l.b16 %v2004
        %v2105 = vunpack.c.l.b16 %v2005
        %v2106 = vunpack.c.l.b16 %v2006
        %v2107 = vunpack.c.l.b16 %v2007
        %v2108 = vunpack.c.l.b16 %v2008
        %v2109 = vunpack.c.l.b16 %v2009
        %v2110 = vunpack.c.l.b16 %v2010
        %v2111 = vunpack.c.l.b16 %v2011
        %v2112 = vunpack.c.l.b16 %v2012
        %v2113 = vunpack.c.l.b16 %v2013
        %v2114 = vunpack.c.l.b16 %v2014
        %v2115 = vunpack.c.l.b16 %v2015
        %v2116 = vunpack.c.l.b16 %v2016
        %v2117 = vunpack.c.l.b16 %v2017
        %v2118 = vunpack.c.l.b16 %v2018
        %v2119 = vunpack.c.l.b16 %v2019
        %v2120 = vunpack.c.l.b16 %v2020
        %v2121 = vpack.c.b16 %v2074, %v2073
        %v2122 = vpack.c.b16 %v2076, %v2075
        %v2123 = vpack.c.b16 %v2078, %v2077
        %v2124 = vpack.c.b16 %v2080, %v2079
        %v2125 = vpack.c.b16 %v2082, %v2081
        %v2126 = vpack.c.b16 %v2084, %v2083
        %v2127 = vpack.c.b16 %v2086, %v2085
        %v2128 = vpack.c.b16 %v2088, %v2087
        %v2129 = vpack.c.b16 %v2090, %v2089
        %v2130 = vpack.c.b16 %v2092, %v2091
        %v2131 = vpack.c.b16 %v2094, %v2093
        %v2132 = vpack.c.b16 %v2096, %v2095
        %v2133 = vpack.c.b16 %v2098, %v2097
        %v2134 = vpack.c.b16 %v2100, %v2099
        %v2135 = vpack.c.b16 %v2102, %v2101
        %v2136 = vpack.c.b16 %v2104, %v2103
        %v2137 = vpack.c.b16 %v2106, %v2105
        %v2138 = vpack.c.b16 %v2108, %v2107
        %v2139 = vpack.c.b16 %v2110, %v2109
        %v2140 = vpack.c.b16 %v2112, %v2111
        %v2141 = vpack.c.b16 %v2114, %v2113
        %v2142 = vpack.c.b16 %v2116, %v2115
        %v2143 = vpack.c.b16 %v2118, %v2117
        %v2144 = vpack.c.b16 %v2120, %v2119
        %2169 = vmatpush.bf16.msra.mxu0 %v2128
        %2170 = vmatpush.bf16.msra.mxu0 %v2127
        %2171 = vmatpush.bf16.msra.mxu0 %v2126
        %2172 = vmatpush.bf16.msra.mxu0 %v2125
        %2173 = vmatpush.bf16.msra.mxu0 %v2124
        %2174 = vmatpush.bf16.msra.mxu0 %v2123
        %2175 = vmatpush.bf16.msra.mxu0 %v2122
        %2176 = vmatpush.bf16.msra.mxu0 %v2121
        %2177 = vmatmul.bf16.gmra.mxu0 %v1970
        %v2178 = vpop.f32.mrf.mxu0
        %v2179 = vadd.f32 %v2023, %v2178
        %v2180 = vpop.f32.mrf.mxu0
        %2181 = vdwg.mxu0
        %2182 = vmatpush.bf16.msra.mxu0 %v2136
        %2183 = vmatpush.bf16.msra.mxu0 %v2135
        %2184 = vmatpush.bf16.msra.mxu0 %v2134
        %2185 = vmatpush.bf16.msra.mxu0 %v2133
        %2186 = vmatpush.bf16.msra.mxu0 %v2132
        %2187 = vmatpush.bf16.msra.mxu0 %v2131
        %2188 = vmatpush.bf16.msra.mxu0 %v2130
        %2189 = vmatpush.bf16.msra.mxu0 %v2129
        %2190 = vmatmul.bf16.gmra.mxu0 %v1971
        %v2191 = vpop.f32.mrf.mxu0
        %v2192 = vadd.f32 %v2179, %v2191
        %v2193 = vpop.f32.mrf.mxu0
        %2194 = vdwg.mxu0
        %2195 = vmatpush.bf16.msra.mxu0 %v2144
        %2196 = vmatpush.bf16.msra.mxu0 %v2143
        %2197 = vmatpush.bf16.msra.mxu0 %v2142
        %2198 = vmatpush.bf16.msra.mxu0 %v2141
        %2199 = vmatpush.bf16.msra.mxu0 %v2140
        %2200 = vmatpush.bf16.msra.mxu0 %v2139
        %2201 = vmatpush.bf16.msra.mxu0 %v2138
        %2202 = vmatpush.bf16.msra.mxu0 %v2137
        %2203 = vmatmul.bf16.gmra.mxu0 %v1972
        %v2204 = vpop.f32.mrf.mxu0
        %v2205 = vadd.f32 %v2192, %v2204
        %v2206 = vpop.f32.mrf.mxu0
        %2207 = vdwg.mxu0
        %v2208 = vld [vmem:[#allocation3] sm:$0xf]
        %v2209 = vld [vmem:[%s711] sm:$0xf]
        %v2210 = vld [vmem:[%s711 + $0x4] sm:$0xf]
        %v2211 = vld [vmem:[%s711 + $0x8] sm:$0xf]
        %v2212 = vld [vmem:[%s711 + $0xc] sm:$0xf]
        %v2213 = vld [vmem:[%s711 + $0x10] sm:$0xf]
        %v2214 = vld [vmem:[%s711 + $0x14] sm:$0xf]
        %v2215 = vld [vmem:[%s711 + $0x18] sm:$0xf]
        %v2216 = vld [vmem:[%s711 + $0x1c] sm:$0xf]
        %v2217 = vld [vmem:[%s711 + $0x20] sm:$0xf]
        %v2218 = vld [vmem:[%s711 + $0x24] sm:$0xf]
        %v2219 = vld [vmem:[%s711 + $0x28] sm:$0xf]
        %v2220 = vld [vmem:[%s711 + $0x2c] sm:$0xf]
        %v2221 = vld [vmem:[%s711 + $0x30] sm:$0xf]
        %v2222 = vld [vmem:[%s711 + $0x34] sm:$0xf]
        %v2223 = vld [vmem:[%s711 + $0x38] sm:$0xf]
        %v2224 = vld [vmem:[%s711 + $0x3c] sm:$0xf]
        %v2241 = vunpack.c.l.b16 %v2209
        %v2242 = vunpack.c.l.b16 %v2210
        %v2243 = vunpack.c.l.b16 %v2211
        %v2244 = vunpack.c.l.b16 %v2212
        %v2245 = vunpack.c.l.b16 %v2213
        %v2246 = vunpack.c.l.b16 %v2214
        %v2247 = vunpack.c.l.b16 %v2215
        %v2248 = vunpack.c.l.b16 %v2216
        %v2249 = vunpack.c.l.b16 %v2217
        %v2250 = vunpack.c.l.b16 %v2218
        %v2251 = vunpack.c.l.b16 %v2219
        %v2252 = vunpack.c.l.b16 %v2220
        %v2253 = vunpack.c.l.b16 %v2221
        %v2254 = vunpack.c.l.b16 %v2222
        %v2255 = vunpack.c.l.b16 %v2223
        %v2256 = vunpack.c.l.b16 %v2224
        %v2257 = vpack.c.b16 %v2242, %v2241
        %v2258 = vpack.c.b16 %v2244, %v2243
        %v2259 = vpack.c.b16 %v2246, %v2245
        %v2260 = vpack.c.b16 %v2248, %v2247
        %v2261 = vpack.c.b16 %v2250, %v2249
        %v2262 = vpack.c.b16 %v2252, %v2251
        %v2263 = vpack.c.b16 %v2254, %v2253
        %v2264 = vpack.c.b16 %v2256, %v2255
        %2273 = vmatpush.bf16.msra.mxu0 %v2264
        %2274 = vmatpush.bf16.msra.mxu0 %v2263
        %2275 = vmatpush.bf16.msra.mxu0 %v2262
        %2276 = vmatpush.bf16.msra.mxu0 %v2261
        %2277 = vmatpush.bf16.msra.mxu0 %v2260
        %2278 = vmatpush.bf16.msra.mxu0 %v2259
        %2279 = vmatpush.bf16.msra.mxu0 %v2258
        %2280 = vmatpush.bf16.msra.mxu0 %v2257
        %2281 = vmatmul.bf16.gmra.mxu0 %v2208
        %v2282 = vpop.f32.mrf.mxu0
        %v2283 = vadd.f32 0.0, %v2282
        %v2284 = vpop.f32.mrf.mxu0
        %2285 = vdwg.mxu0
        %v2286 = vadd.f32 %v2205, %v2283
        %v2287 = vld [vmem:[%s827] sm:$0x1]
        %v2289 = vperm.slane %v2287, 0
        %v2291 = vadd.f32 %v2286, %v2289
        %v2292 = vadd.f32 %v1758, %v2291
        %v2293 = vmul.f32 %v2292, %v833
        %2294 = vadd.xlane.f32.xlu0 %v2293
        %v2295 = vpop.xlane.xlu0 %2294
        %v2296 = vmul.f32 %v2295, 0.010416667
        %v2297 = vsub.f32 %v2292, %v2296
        %v2298 = vmul.f32 %v2297, %v833
        %v2299 = vmul.f32 %v2298, %v2298
        %2300 = vadd.xlane.f32.xlu0 %v2299
        %v2301 = vpop.xlane.xlu0 %2300
        %v2302 = vmul.f32 %v2301, 0.010416667
        %v2303 = vadd.f32 %v2302, 1e-05
        %v2304 = vrsqrt.pop %v2303
        %v2305 = vmul.f32 %v2304, %v2303
        %v2306 = vmul.f32 %v2305, %v2304
        %v2307 = vmul.f32 0.5, %v2306
        %v2308 = vsub.f32 1.5, %v2307
        %v2309 = vmul.f32 %v2304, %v2308
        %vm2310 = vweird.f32 %v2303
        %vm2311 = vweird.f32 %v2304
        %vm2312 = vmor %vm2310, %vm2311
        %v2313 = vsel %vm2312, %v2304, %v2309
        %v2314 = vmul.f32 %v2298, %v2313
        %v2315 = vperm.slane %v1170, 4
        %v2316 = vmul.f32 %v2314, %v2315
        %v2317 = vperm.slane %v1170, 5
        %v2318 = vadd.f32 %v2316, %v2317
        %2319 = vst [vmem:[#allocation2] sm:$0xff] %v2318
        %p2320 = scmp.eq.s32.totalorder %s37, 1
        // Predicated region
        $region113: #{transformer_forward.1} parent=87 // pred_check
          %p2321 = pneg %p2320
        $region114: #{transformer_forward.1} parent=87 // pred_check_branch
          %2323 = sbr.rel (%p2321) target = $region116
        $region115: #{transformer_forward.1} parent=87 // pred_region
          %v2324 = vpack.c.bf16 %v2318, %v2318
          %v2325 = vld [vmem:[%s15] sm:$0xf]
          %v2326 = vld [vmem:[%s15 + $0x4] sm:$0xf]
          %v2327 = vld [vmem:[%s15 + $0x8] sm:$0xf]
          %v2328 = vld [vmem:[%s15 + $0xc] sm:$0xf]
          %v2329 = vld [vmem:[%s15 + $0x10] sm:$0xf]
          %v2330 = vld [vmem:[%s15 + $0x14] sm:$0xf]
          %v2331 = vld [vmem:[%s15 + $0x18] sm:$0xf]
          %v2332 = vld [vmem:[%s15 + $0x1c] sm:$0xf]
          %v2333 = vld [vmem:[%s15 + $0x20] sm:$0xf]
          %v2334 = vld [vmem:[%s15 + $0x24] sm:$0xf]
          %v2335 = vld [vmem:[%s15 + $0x28] sm:$0xf]
          %v2336 = vld [vmem:[%s15 + $0x2c] sm:$0xf]
          %v2337 = vld [vmem:[%s15 + $0x30] sm:$0xf]
          %v2338 = vld [vmem:[%s15 + $0x34] sm:$0xf]
          %v2339 = vld [vmem:[%s15 + $0x38] sm:$0xf]
          %v2340 = vld [vmem:[%s15 + $0x3c] sm:$0xf]
          %v2341 = vld [vmem:[%s16] sm:$0x1]
          %v2343 = vperm.slane %v2341, 0
          %v2361 = vunpack.c.l.b16 %v2325
          %v2362 = vunpack.c.l.b16 %v2326
          %v2363 = vunpack.c.l.b16 %v2327
          %v2364 = vunpack.c.l.b16 %v2328
          %v2365 = vunpack.c.l.b16 %v2329
          %v2366 = vunpack.c.l.b16 %v2330
          %v2367 = vunpack.c.l.b16 %v2331
          %v2368 = vunpack.c.l.b16 %v2332
          %v2369 = vunpack.c.l.b16 %v2333
          %v2370 = vunpack.c.l.b16 %v2334
          %v2371 = vunpack.c.l.b16 %v2335
          %v2372 = vunpack.c.l.b16 %v2336
          %v2373 = vunpack.c.l.b16 %v2337
          %v2374 = vunpack.c.l.b16 %v2338
          %v2375 = vunpack.c.l.b16 %v2339
          %v2376 = vunpack.c.l.b16 %v2340
          %v2377 = vpack.c.b16 %v2362, %v2361
          %v2378 = vpack.c.b16 %v2364, %v2363
          %v2379 = vpack.c.b16 %v2366, %v2365
          %v2380 = vpack.c.b16 %v2368, %v2367
          %v2381 = vpack.c.b16 %v2370, %v2369
          %v2382 = vpack.c.b16 %v2372, %v2371
          %v2383 = vpack.c.b16 %v2374, %v2373
          %v2384 = vpack.c.b16 %v2376, %v2375
          %2393 = vmatpush.bf16.msra.mxu0 %v2384
          %2394 = vmatpush.bf16.msra.mxu0 %v2383
          %2395 = vmatpush.bf16.msra.mxu0 %v2382
          %2396 = vmatpush.bf16.msra.mxu0 %v2381
          %2397 = vmatpush.bf16.msra.mxu0 %v2380
          %2398 = vmatpush.bf16.msra.mxu0 %v2379
          %2399 = vmatpush.bf16.msra.mxu0 %v2378
          %2400 = vmatpush.bf16.msra.mxu0 %v2377
          %2401 = vmatmul.bf16.gmra.mxu0 %v2324
          %v2402 = vpop.f32.mrf.mxu0
          %v2403 = vadd.f32 %v2343, %v2402
          %v2404 = vpop.f32.mrf.mxu0
          %2405 = vdwg.mxu0
          %2406 = vst [vmem:[%s17] sm:$0xff] %v2403
        $region116: #{transformer_forward.1} parent=87 // pred_fallthru
          _
        // Predicated region
        $region117: #{transformer_forward.1} parent=87 // pred_check
          %p2407 = pneg %p467
        $region118: #{transformer_forward.1} parent=87 // pred_check_branch
          %2409 = sbr.rel (%p2407) target = $region120
        $region119: #{transformer_forward.1} parent=87 // pred_region
          _
        $region120: #{transformer_forward.1} parent=87 // pred_fallthru
          _
        // Predicated region
        $region121: #{transformer_forward.1} parent=87 // pred_check
          %p2410 = pneg %p467
        $region122: #{transformer_forward.1} parent=87 // pred_check_branch
          %2412 = sbr.rel (%p2410) target = $region124
        $region123: #{transformer_forward.1} parent=87 // pred_region
          _
        $region124: #{transformer_forward.1} parent=87 // pred_fallthru
          _
      $region88: #{transformer_forward.1} parent=5 // pred_fallthru
        _
      %p2413 = scmp.le.s32.totalorder 2, %s32
      // Predicated region
      $region125: #{transformer_forward.1} parent=5 // pred_check
        %p2414 = pneg %p2413
      $region126: #{transformer_forward.1} parent=5 // pred_check_branch
        %2416 = sbr.rel (%p2414) target = $region128
      $region127: #{transformer_forward.1} parent=5 // pred_region
        %s2417 = ssub.s32 %s32, 2
      $region128: #{transformer_forward.1} parent=5 // pred_fallthru
        _
    $region6: #{transformer_forward.1} parent=1 // loop_footer
      %s36 = sadd.s32 1, %s32
    $region7: #{transformer_forward.1} parent=1 // loop_footer_branch
      %31 = sbr.rel target = $region3
    $region8: #{transformer_forward.1} parent=1 // loop_exit
      _
    %2418 = vsyncpa [#allocation5], 1
    %s2419 = scalar_lea.sflag [#allocation5], 1
    %2420 = vsyncpa %s2419, 1
    %2421 = vsyncpa [#allocation7], 1
    %s2422 = scalar_lea.sflag [#allocation7], 1
    %2423 = vsyncpa %s2422, 1
    %2424 = vsyncpa [#allocation10], 1
    %s2425 = scalar_lea.sflag [#allocation10], 1
    %2426 = vsyncpa %s2425, 1

</llo_original>
